<compile_context>
chip_gen: v7x
topology: tpu7x:2x2x1
jax: 0.10.0
libtpu: 0.0.40
codegen_flags: <defaults>
</compile_context>

<pallas_src>
import functools

import jax
import jax.numpy as jnp
from jax.experimental import pallas as pl
from jax.experimental.pallas import tpu as pltpu

HEAD_PAD = 128  # lane-dense packed output width


def _policy_kernel(n_actions, obs_ref, gum_ref,
                   w1_ref, b1_ref, w2_ref, b2_ref, w3_ref, b3_ref,
                   out_ref):
    A = n_actions
    x = obs_ref[...].astype(jnp.bfloat16)

    # ---- fused trunk: each matmul covers both the action and value branches ----
    h = jnp.dot(x, w1_ref[...], preferred_element_type=jnp.float32) + b1_ref[...]
    h = jnp.maximum(h, 0.0)
    h = jnp.dot(h.astype(jnp.bfloat16), w2_ref[...],
                preferred_element_type=jnp.float32) + b2_ref[...]
    h = jnp.maximum(h, 0.0)
    # fused heads, 128 lanes: [0,A)=logits, [A,2A)=logits copy, [2A]=value, rest 0
    head = jnp.dot(h.astype(jnp.bfloat16), w3_ref[...],
                   preferred_element_type=jnp.float32) + b3_ref[...]

    lane = jax.lax.broadcasted_iota(jnp.int32, head.shape, 1)
    act_mask = lane < A
    neg = jnp.float32(-1e30)

    # ---- log-softmax over the first A lanes (matches Categorical.log_prob) ----
    masked = jnp.where(act_mask, head, neg)
    m = jnp.max(masked, axis=-1, keepdims=True)
    e = jnp.where(act_mask, jnp.exp(masked - m), 0.0)
    norm = m + jnp.log(jnp.sum(e, axis=-1, keepdims=True))        # logsumexp

    # ---- categorical sampling via Gumbel-max (noise precomputed, streamed in) ----
    gumbel = gum_ref[...].astype(jnp.float32)
    scores = jnp.where(act_mask, head + gumbel, neg)
    best = jnp.max(scores, axis=-1, keepdims=True)
    action = jnp.min(jnp.where(scores == best, lane, HEAD_PAD),
                     axis=-1, keepdims=True)                       # (TB, 1) int32
    sel_logit = jnp.sum(jnp.where(lane == action, head, 0.0),
                        axis=-1, keepdims=True)

    # ---- single lane-dense (TB, 128) store -----------------------------------
    # layout: [0,A) logits | [A,2A) log_probs | 2A value | 2A+1 action | 2A+2 log_prob
    in_logp = jnp.logical_and(lane >= A, lane < 2 * A)
    packed = jnp.where(in_logp, head - norm, head)
    packed = jnp.where(lane == 2 * A + 1, action.astype(jnp.float32), packed)
    packed = jnp.where(lane == 2 * A + 2, sel_logit - norm, packed)
    out_ref[...] = packed


def make_policy_params(key, obs_dim, hidden, n_actions):
    """Unfused params; shapes/init match the PyTorch module (W stored (in, out))."""
    ks = jax.random.split(key, 6)

    def lin(kw, fan_in, fan_out, gain):
        w = gain * jax.random.normal(kw, (fan_in, fan_out), jnp.float32) / jnp.sqrt(fan_in)
        b = jnp.zeros((1, fan_out), jnp.float32)
        return w, b

    g = jnp.sqrt(2.0)
    w1a, b1a = lin(ks[0], obs_dim, hidden, g)
    w2a, b2a = lin(ks[1], hidden, hidden, g)
    wla, bla = lin(ks[2], hidden, n_actions, 0.01)
    w1v, b1v = lin(ks[3], obs_dim, hidden, g)
    w2v, b2v = lin(ks[4], hidden, hidden, g)
    wlv, blv = lin(ks[5], hidden, 1, 1.0)
    return dict(w1a=w1a, b1a=b1a, w2a=w2a, b2a=b2a, wla=wla, bla=bla,
                w1v=w1v, b1v=b1v, w2v=w2v, b2v=b2v, wlv=wlv, blv=blv)


def fuse_policy_params(p, n_actions):
    """Fuse action+value trunks into shared / block-diagonal matmuls; bf16 weights."""
    H = p["w2a"].shape[0]
    A = n_actions
    assert 2 * A + 3 <= HEAD_PAD, "action space too large for packed 128-lane output"

    w1 = jnp.concatenate([p["w1a"], p["w1v"]], axis=1)               # (obs, 2H)
    b1 = jnp.concatenate([p["b1a"], p["b1v"]], axis=1)               # (1, 2H)

    w2 = jnp.zeros((2 * H, 2 * H), jnp.float32)
    w2 = w2.at[:H, :H].set(p["w2a"]).at[H:, H:].set(p["w2v"])        # block-diagonal
    b2 = jnp.concatenate([p["b2a"], p["b2v"]], axis=1)

    w3 = jnp.zeros((2 * H, HEAD_PAD), jnp.float32)
    w3 = w3.at[:H, :A].set(p["wla"])                                 # logits
    w3 = w3.at[:H, A:2 * A].set(p["wla"])                            # copy -> log_probs
    w3 = w3.at[H:, 2 * A:2 * A + 1].set(p["wlv"])                    # value
    b3 = jnp.zeros((1, HEAD_PAD), jnp.float32)
    b3 = b3.at[:, :A].set(p["bla"]).at[:, A:2 * A].set(p["bla"])
    b3 = b3.at[:, 2 * A:2 * A + 1].set(p["blv"])

    bf = jnp.bfloat16
    return (w1.astype(bf), b1, w2.astype(bf), b2, w3.astype(bf), b3)


def policy_forward_packed(obs, fused, key, n_actions, tile_b=128):
    """Runs the Pallas kernel; returns the packed (B, 128) output slab."""
    B, obs_dim = obs.shape
    w1, b1, w2, b2, w3, b3 = fused
    H2 = w1.shape[1]

    nb = pl.cdiv(B, tile_b)
    b_pad = nb * tile_b
    if b_pad != B:
        obs = jnp.pad(obs, ((0, b_pad - B), (0, 0)))

    # Gumbel noise for in-kernel Gumbel-max categorical sampling (only the
    # first n_actions lanes are actually consumed inside the kernel).
    gumbel = jax.random.gumbel(key, (b_pad, HEAD_PAD), jnp.float32)

    flops = 2 * b_pad * (obs_dim * H2 + H2 * H2 + H2 * HEAD_PAD)
    bytes_accessed = (obs.size * 4 + gumbel.size * 4
                      + (w1.size + w2.size + w3.size) * 2
                      + (b1.size + b2.size + b3.size) * 4 + b_pad * HEAD_PAD * 4)

    grid_spec = pltpu.PrefetchScalarGridSpec(
        num_scalar_prefetch=0,
        grid=(nb,),
        in_specs=[
            pl.BlockSpec((tile_b, obs_dim), lambda i: (i, 0)),       # obs: streamed
            pl.BlockSpec((tile_b, HEAD_PAD), lambda i: (i, 0)),      # gumbel: streamed
            pl.BlockSpec((obs_dim, H2), lambda i: (0, 0)),           # weights: resident
            pl.BlockSpec((1, H2), lambda i: (0, 0)),
            pl.BlockSpec((H2, H2), lambda i: (0, 0)),
            pl.BlockSpec((1, H2), lambda i: (0, 0)),
            pl.BlockSpec((H2, HEAD_PAD), lambda i: (0, 0)),
            pl.BlockSpec((1, HEAD_PAD), lambda i: (0, 0)),
        ],
        out_specs=pl.BlockSpec((tile_b, HEAD_PAD), lambda i: (i, 0)),
    )

    packed = pl.pallas_call(
        functools.partial(_policy_kernel, n_actions),
        out_shape=jax.ShapeDtypeStruct((b_pad, HEAD_PAD), jnp.float32),
        grid_spec=grid_spec,
        compiler_params=pltpu.CompilerParams(
            dimension_semantics=("parallel",),
        ),
        cost_estimate=pl.CostEstimate(
            flops=flops,
            transcendentals=b_pad * (HEAD_PAD + 1),
            bytes_accessed=bytes_accessed,
        ),
    )(obs, gumbel, w1, b1, w2, b2, w3, b3)
    return packed[:B]


def policy_forward(obs, fused, key, n_actions, tile_b=128):
    """Mirrors Policy.forward: returns (action, value, log_prob)."""
    packed = policy_forward_packed(obs, fused, key, n_actions, tile_b)
    A = n_actions
    action = packed[:, 2 * A + 1].astype(jnp.int32)
    value = packed[:, 2 * A:2 * A + 1]
    log_prob = packed[:, 2 * A + 2]
    return action, value, log_prob


if __name__ == "__main__":
    # shapes consistent with the module: obs_dim=16, hidden=128 (module default), 8 actions
    B, OBS_DIM, HIDDEN, N_ACTIONS, TILE_B = 256, 16, 128, 8, 128

    root = jax.random.PRNGKey(0)
    k_params, k_obs, k_sample = jax.random.split(root, 3)

    raw = make_policy_params(k_params, OBS_DIM, HIDDEN, N_ACTIONS)
    fused = fuse_policy_params(raw, N_ACTIONS)
    obs = jax.random.normal(k_obs, (B, OBS_DIM), jnp.float32)

    packed = policy_forward_packed(obs, fused, k_sample, N_ACTIONS, TILE_B)
    action, value, log_prob = policy_forward(obs, fused, k_sample, N_ACTIONS, TILE_B)
    jax.block_until_ready((packed, action, value, log_prob))

    A = N_ACTIONS
    logits_k = packed[:, :A]
    logp_k = packed[:, A:2 * A]
    value_k = packed[:, 2 * A:2 * A + 1]

    # pure-JAX reference using the same bf16-weight / f32-accumulate arithmetic
    def ref(obs, p):
        def lin(x, w, b):
            return jnp.dot(x.astype(jnp.bfloat16), w.astype(jnp.bfloat16),
                           preferred_element_type=jnp.float32) + b
        ha = jnp.maximum(lin(obs, p["w1a"], p["b1a"]), 0.0)
        ha = jnp.maximum(lin(ha, p["w2a"], p["b2a"]), 0.0)
        logits = lin(ha, p["wla"], p["bla"])
        hv = jnp.maximum(lin(obs, p["w1v"], p["b1v"]), 0.0)
        hv = jnp.maximum(lin(hv, p["w2v"], p["b2v"]), 0.0)
        val = lin(hv, p["wlv"], p["blv"])
        return logits, jax.nn.log_softmax(logits, axis=-1), val

    logits_r, logp_r, value_r = ref(obs, raw)
    assert jnp.allclose(logits_k, logits_r, atol=1e-4, rtol=1e-4), "logits mismatch"
    assert jnp.allclose(logp_k, logp_r, atol=1e-4, rtol=1e-4), "log_probs mismatch"
    assert jnp.allclose(value_k, value_r, atol=1e-4, rtol=1e-4), "value mismatch"

    # sampled action / log_prob consistency (sampler is Gumbel-max, statistically
    # equivalent to torch's Categorical.sample but not bit-identical)
    assert action.shape == (B,) and value.shape == (B, 1) and log_prob.shape == (B,)
    assert bool(jnp.all((action >= 0) & (action < N_ACTIONS)))
    gathered = jnp.take_along_axis(logp_k, action[:, None], axis=1)[:, 0]
    assert jnp.allclose(log_prob, gathered, atol=1e-5), "sampled log_prob mismatch"

    print("KERNEL_OK")
</pallas_src>

<mosaic_0001>
module attributes {stable_mosaic.version = 11 : i64} {
  func.func @_policy_kernel(%arg0: i32, %arg1: memref<128x16xf32, #tpu.memory_space<vmem>>, %arg2: memref<128x128xf32, #tpu.memory_space<vmem>>, %arg3: memref<16x256xbf16, #tpu.memory_space<vmem>>, %arg4: memref<1x256xf32, #tpu.memory_space<vmem>>, %arg5: memref<256x256xbf16, #tpu.memory_space<vmem>>, %arg6: memref<1x256xf32, #tpu.memory_space<vmem>>, %arg7: memref<256x128xbf16, #tpu.memory_space<vmem>>, %arg8: memref<1x128xf32, #tpu.memory_space<vmem>>, %arg9: memref<128x128xf32, #tpu.memory_space<vmem>>) attributes {dimension_semantics = [#tpu.dimension_semantics<parallel>], iteration_bounds = array<i64: 2>, scalar_prefetch = 0 : i64, scratch_operands = 0 : i64, tpu.core_type = #tpu.core_type<tc>, window_params = [{transform_indices = @transform_0, window_bounds = array<i64: 128, 16>}, {transform_indices = @transform_1, window_bounds = array<i64: 128, 128>}, {pipeline_mode = #tpu.pipeline_mode<synchronous>, transform_indices = @transform_2, window_bounds = array<i64: 16, 256>}, {pipeline_mode = #tpu.pipeline_mode<synchronous>, transform_indices = @transform_3, window_bounds = array<i64: 1, 256>}, {pipeline_mode = #tpu.pipeline_mode<synchronous>, transform_indices = @transform_4, window_bounds = array<i64: 256, 256>}, {pipeline_mode = #tpu.pipeline_mode<synchronous>, transform_indices = @transform_5, window_bounds = array<i64: 1, 256>}, {pipeline_mode = #tpu.pipeline_mode<synchronous>, transform_indices = @transform_6, window_bounds = array<i64: 256, 128>}, {pipeline_mode = #tpu.pipeline_mode<synchronous>, transform_indices = @transform_7, window_bounds = array<i64: 1, 128>}, {transform_indices = @transform_8, window_bounds = array<i64: 128, 128>}]} {
    %c0 = arith.constant 0 : index
    %c0_0 = arith.constant 0 : index
    %0 = vector.load %arg1[%c0, %c0_0] : memref<128x16xf32, #tpu.memory_space<vmem>>, vector<128x16xf32>
    %1 = arith.truncf %0 : vector<128x16xf32> to vector<128x16xbf16>
    %c0_1 = arith.constant 0 : index
    %c0_2 = arith.constant 0 : index
    %2 = vector.load %arg3[%c0_1, %c0_2] : memref<16x256xbf16, #tpu.memory_space<vmem>>, vector<16x256xbf16>
    %cst = arith.constant dense<0.000000e+00> : vector<128x256xf32>
    %3 = tpu.matmul %1, %2, %cst {dimension_numbers = #tpu.dot_dimension_numbers<[1], [0], [0], [1], [0, 0, 1, 1], [], []>} : vector<128x16xbf16>, vector<16x256xbf16>, vector<128x256xf32> -> vector<128x256xf32>
    %c0_3 = arith.constant 0 : index
    %c0_4 = arith.constant 0 : index
    %4 = vector.load %arg4[%c0_3, %c0_4] : memref<1x256xf32, #tpu.memory_space<vmem>>, vector<1x256xf32>
    %5 = vector.broadcast %4 : vector<1x256xf32> to vector<128x256xf32>
    %6 = arith.addf %3, %5 : vector<128x256xf32>
    %cst_5 = arith.constant 0.000000e+00 : f32
    %7 = vector.broadcast %cst_5 : f32 to vector<128x256xf32>
    %8 = arith.maximumf %6, %7 : vector<128x256xf32>
    %9 = arith.truncf %8 : vector<128x256xf32> to vector<128x256xbf16>
    %c0_6 = arith.constant 0 : index
    %c0_7 = arith.constant 0 : index
    %10 = vector.load %arg5[%c0_6, %c0_7] : memref<256x256xbf16, #tpu.memory_space<vmem>>, vector<256x256xbf16>
    %cst_8 = arith.constant dense<0.000000e+00> : vector<128x256xf32>
    %11 = tpu.matmul %9, %10, %cst_8 {dimension_numbers = #tpu.dot_dimension_numbers<[1], [0], [0], [1], [0, 0, 1, 1], [], []>} : vector<128x256xbf16>, vector<256x256xbf16>, vector<128x256xf32> -> vector<128x256xf32>
    %c0_9 = arith.constant 0 : index
    %c0_10 = arith.constant 0 : index
    %12 = vector.load %arg6[%c0_9, %c0_10] : memref<1x256xf32, #tpu.memory_space<vmem>>, vector<1x256xf32>
    %13 = vector.broadcast %12 : vector<1x256xf32> to vector<128x256xf32>
    %14 = arith.addf %11, %13 : vector<128x256xf32>
    %cst_11 = arith.constant 0.000000e+00 : f32
    %15 = vector.broadcast %cst_11 : f32 to vector<128x256xf32>
    %16 = arith.maximumf %14, %15 : vector<128x256xf32>
    %17 = arith.truncf %16 : vector<128x256xf32> to vector<128x256xbf16>
    %c0_12 = arith.constant 0 : index
    %c0_13 = arith.constant 0 : index
    %18 = vector.load %arg7[%c0_12, %c0_13] : memref<256x128xbf16, #tpu.memory_space<vmem>>, vector<256x128xbf16>
    %cst_14 = arith.constant dense<0.000000e+00> : vector<128x128xf32>
    %19 = tpu.matmul %17, %18, %cst_14 {dimension_numbers = #tpu.dot_dimension_numbers<[1], [0], [0], [1], [0, 0, 1, 1], [], []>} : vector<128x256xbf16>, vector<256x128xbf16>, vector<128x128xf32> -> vector<128x128xf32>
    %c0_15 = arith.constant 0 : index
    %c0_16 = arith.constant 0 : index
    %20 = vector.load %arg8[%c0_15, %c0_16] : memref<1x128xf32, #tpu.memory_space<vmem>>, vector<1x128xf32>
    %21 = vector.broadcast %20 : vector<1x128xf32> to vector<128x128xf32>
    %22 = arith.addf %19, %21 : vector<128x128xf32>
    %23 = tpu.iota {dimensions = array<i32: 1>} : vector<128x128xi32>
    %c8_i32 = arith.constant 8 : i32
    %24 = vector.broadcast %c8_i32 : i32 to vector<128x128xi32>
    %25 = arith.cmpi slt, %23, %24 : vector<128x128xi32>
    %cst_17 = arith.constant -1.000000e+30 : f32
    %26 = vector.broadcast %cst_17 : f32 to vector<128x128xf32>
    %27 = arith.select %25, %22, %26 : vector<128x128xi1>, vector<128x128xf32>
    %cst_18 = arith.constant dense<0xFF800000> : vector<128xf32>
    %28 = vector.multi_reduction <maximumf>, %27, %cst_18 [1] : vector<128x128xf32> to vector<128xf32>
    %29 = vector.shape_cast %28 : vector<128xf32> to vector<128x1xf32>
    %30 = vector.broadcast %29 : vector<128x1xf32> to vector<128x128xf32>
    %31 = arith.subf %27, %30 : vector<128x128xf32>
    %32 = math.exp %31 : vector<128x128xf32>
    %cst_19 = arith.constant 0.000000e+00 : f32
    %33 = vector.broadcast %cst_19 : f32 to vector<128x128xf32>
    %34 = arith.select %25, %32, %33 : vector<128x128xi1>, vector<128x128xf32>
    %cst_20 = arith.constant dense<0.000000e+00> : vector<128xf32>
    %35 = vector.multi_reduction <add>, %34, %cst_20 [1] : vector<128x128xf32> to vector<128xf32>
    %36 = vector.shape_cast %35 : vector<128xf32> to vector<128x1xf32>
    %37 = math.log %36 : vector<128x1xf32>
    %38 = arith.addf %29, %37 : vector<128x1xf32>
    %c0_21 = arith.constant 0 : index
    %c0_22 = arith.constant 0 : index
    %39 = vector.load %arg2[%c0_21, %c0_22] : memref<128x128xf32, #tpu.memory_space<vmem>>, vector<128x128xf32>
    %40 = arith.addf %22, %39 : vector<128x128xf32>
    %cst_23 = arith.constant -1.000000e+30 : f32
    %41 = vector.broadcast %cst_23 : f32 to vector<128x128xf32>
    %42 = arith.select %25, %40, %41 : vector<128x128xi1>, vector<128x128xf32>
    %cst_24 = arith.constant dense<0xFF800000> : vector<128xf32>
    %43 = vector.multi_reduction <maximumf>, %42, %cst_24 [1] : vector<128x128xf32> to vector<128xf32>
    %44 = vector.shape_cast %43 : vector<128xf32> to vector<128x1xf32>
    %45 = vector.broadcast %44 : vector<128x1xf32> to vector<128x128xf32>
    %46 = arith.cmpf oeq, %42, %45 : vector<128x128xf32>
    %c128_i32 = arith.constant 128 : i32
    %47 = vector.broadcast %c128_i32 : i32 to vector<128x128xi32>
    %48 = arith.select %46, %23, %47 : vector<128x128xi1>, vector<128x128xi32>
    %cst_25 = arith.constant dense<2147483647> : vector<128xi32>
    %49 = vector.multi_reduction <minsi>, %48, %cst_25 [1] : vector<128x128xi32> to vector<128xi32>
    %50 = vector.shape_cast %49 : vector<128xi32> to vector<128x1xi32>
    %51 = vector.broadcast %50 : vector<128x1xi32> to vector<128x128xi32>
    %52 = arith.cmpi eq, %23, %51 : vector<128x128xi32>
    %cst_26 = arith.constant 0.000000e+00 : f32
    %53 = vector.broadcast %cst_26 : f32 to vector<128x128xf32>
    %54 = arith.select %52, %22, %53 : vector<128x128xi1>, vector<128x128xf32>
    %cst_27 = arith.constant dense<0.000000e+00> : vector<128xf32>
    %55 = vector.multi_reduction <add>, %54, %cst_27 [1] : vector<128x128xf32> to vector<128xf32>
    %56 = vector.shape_cast %55 : vector<128xf32> to vector<128x1xf32>
    %c8_i32_28 = arith.constant 8 : i32
    %57 = vector.broadcast %c8_i32_28 : i32 to vector<128x128xi32>
    %58 = arith.cmpi sge, %23, %57 : vector<128x128xi32>
    %c16_i32 = arith.constant 16 : i32
    %59 = vector.broadcast %c16_i32 : i32 to vector<128x128xi32>
    %60 = arith.cmpi slt, %23, %59 : vector<128x128xi32>
    %61 = arith.andi %58, %60 : vector<128x128xi1>
    %62 = vector.broadcast %38 : vector<128x1xf32> to vector<128x128xf32>
    %63 = arith.subf %22, %62 : vector<128x128xf32>
    %64 = arith.select %61, %63, %22 : vector<128x128xi1>, vector<128x128xf32>
    %c17_i32 = arith.constant 17 : i32
    %65 = vector.broadcast %c17_i32 : i32 to vector<128x128xi32>
    %66 = arith.cmpi eq, %23, %65 : vector<128x128xi32>
    %67 = arith.sitofp %50 : vector<128x1xi32> to vector<128x1xf32>
    %68 = vector.shape_cast %67 : vector<128x1xf32> to vector<128x1xf32>
    %69 = vector.broadcast %68 : vector<128x1xf32> to vector<128x128xf32>
    %70 = arith.select %66, %69, %64 : vector<128x128xi1>, vector<128x128xf32>
    %c18_i32 = arith.constant 18 : i32
    %71 = vector.broadcast %c18_i32 : i32 to vector<128x128xi32>
    %72 = arith.cmpi eq, %23, %71 : vector<128x128xi32>
    %73 = arith.subf %56, %38 : vector<128x1xf32>
    %74 = vector.shape_cast %73 : vector<128x1xf32> to vector<128x1xf32>
    %75 = vector.broadcast %74 : vector<128x1xf32> to vector<128x128xf32>
    %76 = arith.select %72, %75, %70 : vector<128x128xi1>, vector<128x128xf32>
    %c0_29 = arith.constant 0 : index
    %c0_30 = arith.constant 0 : index
    %77 = vector.load %arg9[%c0_29, %c0_30] : memref<128x128xf32, #tpu.memory_space<vmem>>, vector<128x128xf32>
    tpu.vector_store %arg9[%c0_29, %c0_30], %76 {strides = array<i32>} : memref<128x128xf32, #tpu.memory_space<vmem>>, vector<128x128xf32>,
    return
  }
  func.func @transform_0(%arg0: i32) -> (i32, i32) {
    %c0_i32 = arith.constant 0 : i32
    %c0_i32_0 = arith.constant 0 : i32
    return %arg0, %c0_i32 : i32, i32
  }
  func.func @transform_1(%arg0: i32) -> (i32, i32) {
    %c0_i32 = arith.constant 0 : i32
    %c0_i32_0 = arith.constant 0 : i32
    return %arg0, %c0_i32 : i32, i32
  }
  func.func @transform_2(%arg0: i32) -> (i32, i32) {
    %c0_i32 = arith.constant 0 : i32
    %c0_i32_0 = arith.constant 0 : i32
    %c0_i32_1 = arith.constant 0 : i32
    return %c0_i32, %c0_i32_0 : i32, i32
  }
  func.func @transform_3(%arg0: i32) -> (i32, i32) {
    %c0_i32 = arith.constant 0 : i32
    %c0_i32_0 = arith.constant 0 : i32
    %c0_i32_1 = arith.constant 0 : i32
    return %c0_i32, %c0_i32_0 : i32, i32
  }
  func.func @transform_4(%arg0: i32) -> (i32, i32) {
    %c0_i32 = arith.constant 0 : i32
    %c0_i32_0 = arith.constant 0 : i32
    %c0_i32_1 = arith.constant 0 : i32
    return %c0_i32, %c0_i32_0 : i32, i32
  }
  func.func @transform_5(%arg0: i32) -> (i32, i32) {
    %c0_i32 = arith.constant 0 : i32
    %c0_i32_0 = arith.constant 0 : i32
    %c0_i32_1 = arith.constant 0 : i32
    return %c0_i32, %c0_i32_0 : i32, i32
  }
  func.func @transform_6(%arg0: i32) -> (i32, i32) {
    %c0_i32 = arith.constant 0 : i32
    %c0_i32_0 = arith.constant 0 : i32
    %c0_i32_1 = arith.constant 0 : i32
    return %c0_i32, %c0_i32_0 : i32, i32
  }
  func.func @transform_7(%arg0: i32) -> (i32, i32) {
    %c0_i32 = arith.constant 0 : i32
    %c0_i32_0 = arith.constant 0 : i32
    %c0_i32_1 = arith.constant 0 : i32
    return %c0_i32, %c0_i32_0 : i32, i32
  }
  func.func @transform_8(%arg0: i32) -> (i32, i32) {
    %c0_i32 = arith.constant 0 : i32
    %c0_i32_0 = arith.constant 0 : i32
    return %arg0, %c0_i32 : i32, i32
  }
}

</mosaic_0001>

<llo_original>
// kernel: tpu_custom_call.1
$region0: #{tpu_custom_call.1}
  #allocation0 [shape = 'u32[]', space=smem, size = 0x4, offset = 0x4, fixed_abs, tag = 'smem constant byte address 0x4 - core index']
  #allocation1 [shape = 'u32[144,128]{1,0:T(1,128)}', space=vmem, size = 0x12000, scoped, tag = 'internal scratch']
  %s0 = inlined_call_operand.vmem [shape: f32[256,16], index: 0, kind: input, shape index: {}]
  %s1 = inlined_call_operand.vmem [shape: f32[256,128], index: 1, kind: input, shape index: {}]
  %s2 = inlined_call_operand.vmem [shape: bf16[16,256], index: 2, kind: input, shape index: {}]
  %s3 = inlined_call_operand.vmem [shape: f32[1,256], index: 3, kind: input, shape index: {}]
  %s4 = inlined_call_operand.hbm [shape: bf16[256,256], index: 4, kind: input, shape index: {}]
  %s5 = inlined_call_operand.vmem [shape: f32[1,256], index: 5, kind: input, shape index: {}]
  %s6 = inlined_call_operand.hbm [shape: bf16[256,128], index: 6, kind: input, shape index: {}]
  %s7 = inlined_call_operand.vmem [shape: f32[1,128], index: 7, kind: input, shape index: {}]
  %s8 = inlined_call_operand.hbm [shape: f32[256,128], index: 8, kind: output, shape index: {}]
  %s9 = sld [smem:[#allocation0]]
  $region73: #{tpu_custom_call.1} parent=0
    _
  %s11 = ssub.s32 1, %s9
  %s12 = scalar_select 0, %s11, %s9
  $region1: #{tpu_custom_call.1} parent=0
    #allocation2 [shape = 'u8[131072]{0}', space=vmem, size = 0x20000, scoped, tag = 'input window, operand 4, single buffered']
    #allocation3 [shape = 's32[2]{0}', space=sflag, size = 0x8, scoped, tag = 'scoped memory for tpu_custom_call.1']
    #allocation4 [shape = 's32[2]{0}', space=sflag, size = 0x8, scoped, tag = 'scoped memory for tpu_custom_call.1']
    #allocation5 [shape = 'u8[65536]{0}', space=vmem, size = 0x10000, scoped, tag = 'input window, operand 6, single buffered']
    #allocation6 [shape = 's32[1]{0}', space=sflag, size = 0x4, scoped, tag = 'scoped memory for tpu_custom_call.1']
    #allocation7 [shape = 'u8[131072]{0}', space=vmem, size = 0x20000, scoped, tag = 'output window, operand 0']
    %13 = vsyncpa [#allocation3], 0
    %14 = vsyncpa [#allocation6], 0
    %15 = vsyncpa [#allocation4], 0
    %s16 = scalar_lea.sflag [#allocation4], 1
    %17 = vsyncpa %s16, 0
    loop: start=0, step=1, limit=4
    $region2: #{tpu_custom_call.1} parent=1 // loop_pre_header
      _
    $region3: #{tpu_custom_call.1} parent=1 // loop_header
      %s19 = sphi 0, %s23
      %p20 = scmp.ge.s32.totalorder %s19, 4
      %s29 = sphi 0, %s31
      %s32 = sphi 0, %s29
      %s33 = sphi 0, %s32
      %s49 = sphi 0, %s33
      %s55 = sphi 0, %s57
      %s58 = sphi 0, %s55
      %s59 = sphi 0, %s58
      %s75 = sphi 0, %s59
      %s79 = sphi 0, %s79
      %s81 = sphi 0, %s79
      %s82 = sphi 0, %s81
      %s96 = sphi 0, %s82
      %s100 = sphi 0, %s100
      %s102 = sphi 0, %s100
      %s103 = sphi 0, %s102
      %s117 = sphi 0, %s103
      %s121 = sphi 0, %s121
      %s123 = sphi 0, %s121
      %s124 = sphi 0, %s123
      %s138 = sphi 0, %s124
      %s142 = sphi 0, %s142
      %s144 = sphi 0, %s142
      %s145 = sphi 0, %s144
      %s159 = sphi 0, %s145
      %s163 = sphi 0, %s163
      %s165 = sphi 0, %s163
      %s166 = sphi 0, %s165
      %s180 = sphi 0, %s166
      %s184 = sphi 0, %s184
      %s186 = sphi 0, %s184
      %s187 = sphi 0, %s186
      %s201 = sphi 0, %s187
      %s207 = sphi 0, %s209
      %s210 = sphi 0, %s207
      %s211 = sphi 0, %s210
      %s227 = sphi 0, %s211
    $region4: #{tpu_custom_call.1} parent=1 // loop_header_branch
      %22 = sbr.rel (%p20) target = $region8
    $region5: #{tpu_custom_call.1} parent=1 // loop_body
      %s24 = ssub.s32 %s19, 1
      %s25 = ssub.s32 %s19, 2
      %s26 = sadd.s32 %s19, 1
      %s27 = ssub.s32 %s19, %s26
      %p28 = scmp.eq.s32.totalorder %s27, 0
      %s30 = sadd.s32 %s29, 1
      %s31 = scalar_select %p28, %s29, %s30
      %p34 = pneg %p28
      %p35 = scmp.eq.s32.totalorder %s19, 1
      %p36 = por %p34, %p35
      %p37 = scmp.ne.s32.totalorder %s29, %s32
      %p38 = scmp.eq.s32.totalorder %s19, 0
      %p39 = por %p37, %p38
      %p40 = scmp.ne.s32.totalorder %s29, %s32
      %p41 = scmp.eq.s32.totalorder %s24, 1
      %p42 = por %p40, %p41
      %p43 = scmp.ne.s32.totalorder %s32, %s33
      %p44 = scmp.eq.s32.totalorder %s24, 0
      %p45 = por %p43, %p44
      %p46 = scmp.ne.s32.totalorder %s32, %s33
      %p47 = scmp.eq.s32.totalorder %s25, 1
      %p48 = por %p46, %p47
      %p50 = scmp.ne.s32.totalorder %s33, %s49
      %p51 = scmp.eq.s32.totalorder %s25, 0
      %p52 = por %p50, %p51
      %s53 = ssub.s32 %s19, %s26
      %p54 = scmp.eq.s32.totalorder %s53, 0
      %s56 = sadd.s32 %s55, 1
      %s57 = scalar_select %p54, %s55, %s56
      %p60 = pneg %p54
      %p61 = scmp.eq.s32.totalorder %s19, 1
      %p62 = por %p60, %p61
      %p63 = scmp.ne.s32.totalorder %s55, %s58
      %p64 = scmp.eq.s32.totalorder %s19, 0
      %p65 = por %p63, %p64
      %p66 = scmp.ne.s32.totalorder %s55, %s58
      %p67 = scmp.eq.s32.totalorder %s24, 1
      %p68 = por %p66, %p67
      %p69 = scmp.ne.s32.totalorder %s58, %s59
      %p70 = scmp.eq.s32.totalorder %s24, 0
      %p71 = por %p69, %p70
      %p72 = scmp.ne.s32.totalorder %s58, %s59
      %p73 = scmp.eq.s32.totalorder %s25, 1
      %p74 = por %p72, %p73
      %p76 = scmp.ne.s32.totalorder %s59, %s75
      %p77 = scmp.eq.s32.totalorder %s25, 0
      %p78 = por %p76, %p77
      %s80 = sadd.s32 %s79, 1
      %p83 = scmp.eq.s32.totalorder %s19, 1
      %p84 = scmp.ne.s32.totalorder %s79, %s81
      %p85 = scmp.eq.s32.totalorder %s19, 0
      %p86 = por %p84, %p85
      %p87 = scmp.ne.s32.totalorder %s79, %s81
      %p88 = scmp.eq.s32.totalorder %s24, 1
      %p89 = por %p87, %p88
      %p90 = scmp.ne.s32.totalorder %s81, %s82
      %p91 = scmp.eq.s32.totalorder %s24, 0
      %p92 = por %p90, %p91
      %p93 = scmp.ne.s32.totalorder %s81, %s82
      %p94 = scmp.eq.s32.totalorder %s25, 1
      %p95 = por %p93, %p94
      %p97 = scmp.ne.s32.totalorder %s82, %s96
      %p98 = scmp.eq.s32.totalorder %s25, 0
      %p99 = por %p97, %p98
      %s101 = sadd.s32 %s100, 1
      %p104 = scmp.eq.s32.totalorder %s19, 1
      %p105 = scmp.ne.s32.totalorder %s100, %s102
      %p106 = scmp.eq.s32.totalorder %s19, 0
      %p107 = por %p105, %p106
      %p108 = scmp.ne.s32.totalorder %s100, %s102
      %p109 = scmp.eq.s32.totalorder %s24, 1
      %p110 = por %p108, %p109
      %p111 = scmp.ne.s32.totalorder %s102, %s103
      %p112 = scmp.eq.s32.totalorder %s24, 0
      %p113 = por %p111, %p112
      %p114 = scmp.ne.s32.totalorder %s102, %s103
      %p115 = scmp.eq.s32.totalorder %s25, 1
      %p116 = por %p114, %p115
      %p118 = scmp.ne.s32.totalorder %s103, %s117
      %p119 = scmp.eq.s32.totalorder %s25, 0
      %p120 = por %p118, %p119
      %s122 = sadd.s32 %s121, 1
      %p125 = scmp.eq.s32.totalorder %s19, 1
      %p126 = scmp.ne.s32.totalorder %s121, %s123
      %p127 = scmp.eq.s32.totalorder %s19, 0
      %p128 = por %p126, %p127
      %p129 = scmp.ne.s32.totalorder %s121, %s123
      %p130 = scmp.eq.s32.totalorder %s24, 1
      %p131 = por %p129, %p130
      %p132 = scmp.ne.s32.totalorder %s123, %s124
      %p133 = scmp.eq.s32.totalorder %s24, 0
      %p134 = por %p132, %p133
      %p135 = scmp.ne.s32.totalorder %s123, %s124
      %p136 = scmp.eq.s32.totalorder %s25, 1
      %p137 = por %p135, %p136
      %p139 = scmp.ne.s32.totalorder %s124, %s138
      %p140 = scmp.eq.s32.totalorder %s25, 0
      %p141 = por %p139, %p140
      %s143 = sadd.s32 %s142, 1
      %p146 = scmp.eq.s32.totalorder %s19, 1
      %p147 = scmp.ne.s32.totalorder %s142, %s144
      %p148 = scmp.eq.s32.totalorder %s19, 0
      %p149 = por %p147, %p148
      %p150 = scmp.ne.s32.totalorder %s142, %s144
      %p151 = scmp.eq.s32.totalorder %s24, 1
      %p152 = por %p150, %p151
      %p153 = scmp.ne.s32.totalorder %s144, %s145
      %p154 = scmp.eq.s32.totalorder %s24, 0
      %p155 = por %p153, %p154
      %p156 = scmp.ne.s32.totalorder %s144, %s145
      %p157 = scmp.eq.s32.totalorder %s25, 1
      %p158 = por %p156, %p157
      %p160 = scmp.ne.s32.totalorder %s145, %s159
      %p161 = scmp.eq.s32.totalorder %s25, 0
      %p162 = por %p160, %p161
      %s164 = sadd.s32 %s163, 1
      %p167 = scmp.eq.s32.totalorder %s19, 1
      %p168 = scmp.ne.s32.totalorder %s163, %s165
      %p169 = scmp.eq.s32.totalorder %s19, 0
      %p170 = por %p168, %p169
      %p171 = scmp.ne.s32.totalorder %s163, %s165
      %p172 = scmp.eq.s32.totalorder %s24, 1
      %p173 = por %p171, %p172
      %p174 = scmp.ne.s32.totalorder %s165, %s166
      %p175 = scmp.eq.s32.totalorder %s24, 0
      %p176 = por %p174, %p175
      %p177 = scmp.ne.s32.totalorder %s165, %s166
      %p178 = scmp.eq.s32.totalorder %s25, 1
      %p179 = por %p177, %p178
      %p181 = scmp.ne.s32.totalorder %s166, %s180
      %p182 = scmp.eq.s32.totalorder %s25, 0
      %p183 = por %p181, %p182
      %s185 = sadd.s32 %s184, 1
      %p188 = scmp.eq.s32.totalorder %s19, 1
      %p189 = scmp.ne.s32.totalorder %s184, %s186
      %p190 = scmp.eq.s32.totalorder %s19, 0
      %p191 = por %p189, %p190
      %p192 = scmp.ne.s32.totalorder %s184, %s186
      %p193 = scmp.eq.s32.totalorder %s24, 1
      %p194 = por %p192, %p193
      %p195 = scmp.ne.s32.totalorder %s186, %s187
      %p196 = scmp.eq.s32.totalorder %s24, 0
      %p197 = por %p195, %p196
      %p198 = scmp.ne.s32.totalorder %s186, %s187
      %p199 = scmp.eq.s32.totalorder %s25, 1
      %p200 = por %p198, %p199
      %p202 = scmp.ne.s32.totalorder %s187, %s201
      %p203 = scmp.eq.s32.totalorder %s25, 0
      %p204 = por %p202, %p203
      %s205 = ssub.s32 %s19, %s26
      %p206 = scmp.eq.s32.totalorder %s205, 0
      %s208 = sadd.s32 %s207, 1
      %s209 = scalar_select %p206, %s207, %s208
      %p212 = pneg %p206
      %p213 = scmp.eq.s32.totalorder %s19, 1
      %p214 = por %p212, %p213
      %p215 = scmp.ne.s32.totalorder %s207, %s210
      %p216 = scmp.eq.s32.totalorder %s19, 0
      %p217 = por %p215, %p216
      %p218 = scmp.ne.s32.totalorder %s207, %s210
      %p219 = scmp.eq.s32.totalorder %s24, 1
      %p220 = por %p218, %p219
      %p221 = scmp.ne.s32.totalorder %s210, %s211
      %p222 = scmp.eq.s32.totalorder %s24, 0
      %p223 = por %p221, %p222
      %p224 = scmp.ne.s32.totalorder %s210, %s211
      %p225 = scmp.eq.s32.totalorder %s25, 1
      %p226 = por %p224, %p225
      %p228 = scmp.ne.s32.totalorder %s211, %s227
      %p229 = scmp.eq.s32.totalorder %s25, 0
      %p230 = por %p228, %p229
      %p231 = scmp.le.s32.totalorder 1, %s19
      %p232 = scmp.lt.s32.totalorder %s19, 3
      %p233 = pnand %p231, %p232
      %p234 = pneg %p233
      // Predicated region
      $region9: #{tpu_custom_call.1} parent=5 // pred_check
        _
      $region10: #{tpu_custom_call.1} parent=5 // pred_check_branch
        %236 = sbr.rel (%p233) target = $region12
      $region11: #{tpu_custom_call.1} parent=5 // pred_region
        %s237 = ssub.s32 %s19, 1
        // Predicated region
        $region13: #{tpu_custom_call.1} parent=11 // pred_check
          %p238 = pneg %p92
        $region14: #{tpu_custom_call.1} parent=11 // pred_check_branch
          %240 = sbr.rel (%p238) target = $region16
        $region15: #{tpu_custom_call.1} parent=11 // pred_region
          _
        $region16: #{tpu_custom_call.1} parent=11 // pred_fallthru
          _
        // Predicated region
        $region17: #{tpu_custom_call.1} parent=11 // pred_check
          %p241 = pneg %p113
        $region18: #{tpu_custom_call.1} parent=11 // pred_check_branch
          %243 = sbr.rel (%p241) target = $region20
        $region19: #{tpu_custom_call.1} parent=11 // pred_region
          _
        $region20: #{tpu_custom_call.1} parent=11 // pred_fallthru
          _
        // Predicated region
        $region21: #{tpu_custom_call.1} parent=11 // pred_check
          %p244 = pneg %p134
        $region22: #{tpu_custom_call.1} parent=11 // pred_check_branch
          %246 = sbr.rel (%p244) target = $region24
        $region23: #{tpu_custom_call.1} parent=11 // pred_region
          %s248 = ssub.s32 4096, 4096
          %249 = vsyncadd [#allocation3], %s248
          %s250 = sshll.u32 [#allocation2], 4
          %s251 = int_to_ptr.vmem [resolvable:$true] %s250
          %256 = dma.hbm_to_vmem [thread:$0]  %s4, 4096, %s251, [#allocation3], 128, 128, 8
        $region24: #{tpu_custom_call.1} parent=11 // pred_fallthru
          _
        // Predicated region
        $region25: #{tpu_custom_call.1} parent=11 // pred_check
          %p257 = pneg %p155
        $region26: #{tpu_custom_call.1} parent=11 // pred_check_branch
          %259 = sbr.rel (%p257) target = $region28
        $region27: #{tpu_custom_call.1} parent=11 // pred_region
          _
        $region28: #{tpu_custom_call.1} parent=11 // pred_fallthru
          _
        // Predicated region
        $region29: #{tpu_custom_call.1} parent=11 // pred_check
          %p260 = pneg %p176
        $region30: #{tpu_custom_call.1} parent=11 // pred_check_branch
          %262 = sbr.rel (%p260) target = $region32
        $region31: #{tpu_custom_call.1} parent=11 // pred_region
          %s264 = ssub.s32 2048, 2048
          %265 = vsyncadd [#allocation6], %s264
          %s266 = sshll.u32 [#allocation5], 4
          %s267 = int_to_ptr.vmem [resolvable:$true] %s266
          %272 = dma.hbm_to_vmem [thread:$0]  %s6, 2048, %s267, [#allocation6], 64, 64, 4
        $region32: #{tpu_custom_call.1} parent=11 // pred_fallthru
          _
        // Predicated region
        $region33: #{tpu_custom_call.1} parent=11 // pred_check
          %p273 = pneg %p197
        $region34: #{tpu_custom_call.1} parent=11 // pred_check_branch
          %275 = sbr.rel (%p273) target = $region36
        $region35: #{tpu_custom_call.1} parent=11 // pred_region
          _
        $region36: #{tpu_custom_call.1} parent=11 // pred_fallthru
          _
      $region12: #{tpu_custom_call.1} parent=5 // pred_fallthru
        _
      %p276 = scmp.lt.s32.totalorder %s19, 2
      // Predicated region
      $region37: #{tpu_custom_call.1} parent=5 // pred_check
        %p277 = pneg %p276
      $region38: #{tpu_custom_call.1} parent=5 // pred_check_branch
        %279 = sbr.rel (%p277) target = $region40
      $region39: #{tpu_custom_call.1} parent=5 // pred_region
        // Predicated region
        $region41: #{tpu_custom_call.1} parent=39 // pred_check
          %p280 = pneg %p39
        $region42: #{tpu_custom_call.1} parent=39 // pred_check_branch
          %282 = sbr.rel (%p280) target = $region44
        $region43: #{tpu_custom_call.1} parent=39 // pred_region
          %s283 = smul.u32 16, %s19
          %p284 = scmp.lt.s32.totalorder %s283, 31
          %s285 = scalar_select %p284, %s283, 31
          %s286 = smul.addr %s285, 8
          %s287 = scalar_lea.vmem %s0, %s286
          %s288 = smul.u32 16, %s19
        $region44: #{tpu_custom_call.1} parent=39 // pred_fallthru
          _
        // Predicated region
        $region45: #{tpu_custom_call.1} parent=39 // pred_check
          %p289 = pneg %p65
        $region46: #{tpu_custom_call.1} parent=39 // pred_check_branch
          %291 = sbr.rel (%p289) target = $region48
        $region47: #{tpu_custom_call.1} parent=39 // pred_region
          %s292 = smul.u32 16, %s19
          %p293 = scmp.lt.s32.totalorder %s292, 31
          %s294 = scalar_select %p293, %s292, 31
          %s295 = smul.addr %s294, 8
          %s296 = scalar_lea.vmem %s1, %s295
          %s297 = smul.u32 16, %s19
        $region48: #{tpu_custom_call.1} parent=39 // pred_fallthru
          _
      $region40: #{tpu_custom_call.1} parent=5 // pred_fallthru
        _
      %p298 = scmp.le.s32.totalorder 1, %s19
      %p299 = scmp.lt.s32.totalorder %s19, 3
      %p300 = pnand %p298, %p299
      %p301 = pneg %p300
      // Predicated region
      $region49: #{tpu_custom_call.1} parent=5 // pred_check
        _
      $region50: #{tpu_custom_call.1} parent=5 // pred_check_branch
        %303 = sbr.rel (%p300) target = $region52
      $region51: #{tpu_custom_call.1} parent=5 // pred_region
        %s304 = ssub.s32 %s19, 1
        // Predicated region
        $region53: #{tpu_custom_call.1} parent=51 // pred_check
          %p305 = pneg %p134
        $region54: #{tpu_custom_call.1} parent=51 // pred_check_branch
          %307 = sbr.rel (%p305) target = $region56
        $region55: #{tpu_custom_call.1} parent=51 // pred_region
          %308 = dma.done [#allocation3], 4096
        $region56: #{tpu_custom_call.1} parent=51 // pred_fallthru
          _
        // Predicated region
        $region57: #{tpu_custom_call.1} parent=51 // pred_check
          %p309 = pneg %p176
        $region58: #{tpu_custom_call.1} parent=51 // pred_check_branch
          %311 = sbr.rel (%p309) target = $region60
        $region59: #{tpu_custom_call.1} parent=51 // pred_region
          %312 = dma.done [#allocation6], 2048
        $region60: #{tpu_custom_call.1} parent=51 // pred_fallthru
          _
        %s313 = smul.u32 16, %s24
        %p314 = scmp.lt.s32.totalorder %s313, 31
        %s315 = scalar_select %p314, %s313, 31
        %s316 = smul.addr %s315, 8
        %s317 = scalar_lea.vmem %s0, %s316
        %p318 = pneg %p45
        %p319 = pneg %p42
        %s320 = smul.u32 16, %s24
        %p321 = scmp.lt.s32.totalorder %s320, 31
        %s322 = scalar_select %p321, %s320, 31
        %s323 = smul.addr %s322, 8
        %s324 = scalar_lea.vmem %s1, %s323
        %p325 = pneg %p71
        %p326 = pneg %p68
        %p327 = pneg %p92
        %p328 = pneg %p89
        %p329 = pneg %p113
        %p330 = pneg %p110
        %p331 = pneg %p134
        %p332 = pneg %p131
        %p333 = pneg %p155
        %p334 = pneg %p152
        %p335 = pneg %p176
        %p336 = pneg %p173
        %p337 = pneg %p197
        %p338 = pneg %p194
        %p339 = pneg %p223
        %p340 = pneg %p220
        %s341 = sand.u32 %s210, 1
        %s342 = scalar_lea.sflag [#allocation4], %s341
        %s343 = sand.u32 %s210, 1
        %s344 = smul.addr %s343, 128
        %s345 = scalar_lea.vmem [#allocation7], %s344
        %s346 = smul.u32 16, %s24
        %p347 = scmp.lt.s32.totalorder %s346, 31
        %s348 = scalar_select %p347, %s346, 31
        %s349 = smul.addr %s348, 8
        %s350 = scalar_lea.vmem %s0, %s349
        %s351 = smul.u32 16, %s24
        %s352 = smul.u32 16, %s24
        %p353 = scmp.lt.s32.totalorder %s352, 31
        %s354 = scalar_select %p353, %s352, 31
        %s355 = smul.addr %s354, 8
        %s356 = scalar_lea.vmem %s1, %s355
        %s357 = smul.u32 16, %s24
        %s358 = smul.u32 16, %s24
        %v360 = vld [vmem:[%s350] sm:$0xff]
        %v361 = vld [vmem:[%s350 + $0x8] sm:$0xff]
        %v362 = vld [vmem:[%s350 + $0x10] sm:$0xff]
        %v363 = vld [vmem:[%s350 + $0x18] sm:$0xff]
        %v364 = vld [vmem:[%s350 + $0x20] sm:$0xff]
        %v365 = vld [vmem:[%s350 + $0x28] sm:$0xff]
        %v366 = vld [vmem:[%s350 + $0x30] sm:$0xff]
        %v367 = vld [vmem:[%s350 + $0x38] sm:$0xff]
        %v368 = vld [vmem:[%s350 + $0x40] sm:$0xff]
        %v369 = vld [vmem:[%s350 + $0x48] sm:$0xff]
        %v370 = vld [vmem:[%s350 + $0x50] sm:$0xff]
        %v371 = vld [vmem:[%s350 + $0x58] sm:$0xff]
        %v372 = vld [vmem:[%s350 + $0x60] sm:$0xff]
        %v373 = vld [vmem:[%s350 + $0x68] sm:$0xff]
        %v374 = vld [vmem:[%s350 + $0x70] sm:$0xff]
        %v375 = vld [vmem:[%s350 + $0x78] sm:$0xff]
        %v376 = vpack.c.bf16 %v361, %v360
        %v377 = vpack.c.bf16 %v363, %v362
        %v378 = vpack.c.bf16 %v365, %v364
        %v379 = vpack.c.bf16 %v367, %v366
        %v380 = vpack.c.bf16 %v369, %v368
        %v381 = vpack.c.bf16 %v371, %v370
        %v382 = vpack.c.bf16 %v373, %v372
        %v383 = vpack.c.bf16 %v375, %v374
        %v384 = vld [vmem:[%s2] sm:$0xff]
        %v385 = vld [vmem:[%s2 + $0x8] sm:$0xff]
        %v386 = vld [vmem:[%s3] sm:$0x3]
        %v388 = vlaneseq
        %v389 = vshrl.u32 %v388, 7
        %v390 = vsub.s32 0, %v389
        %v391 = vrot.slane %v386, %v390
        %v392 = vlaneseq
        %v393 = vshrl.u32 %v392, 7
        %v394 = vsub.s32 1, %v393
        %v395 = vrot.slane %v386, %v394
        %v400 = vunpack.c.l.b16 %v384
        %v401 = vunpack.c.h.b16 %v384
        %v402 = vunpack.c.l.b16 %v385
        %v403 = vunpack.c.h.b16 %v385
        %v404 = vpack.c.b16 %v402, %v400
        %v405 = vpack.c.b16 %v403, %v401
        %vm408 = vcmask 130048
        %v410 = vsel %vm408, %v376, 0
        %v413 = vsel %vm408, %v377, 0
        %v416 = vsel %vm408, %v378, 0
        %v419 = vsel %vm408, %v379, 0
        %v422 = vsel %vm408, %v380, 0
        %v425 = vsel %vm408, %v381, 0
        %v428 = vsel %vm408, %v382, 0
        %v431 = vsel %vm408, %v383, 0
        %433 = vmatprep.subr.bf16.mxu0 %v405
        %434 = vmatpush1.bf16.msra.mxu0 %v404
        %435 = vmatprep.subr.bf16.mxu0 0
        %436 = vmatpush1.bf16.msra.mxu0 0
        %437 = vmatprep.subr.bf16.mxu0 0
        %438 = vmatpush1.bf16.msra.mxu0 0
        %439 = vmatprep.subr.bf16.mxu0 0
        %440 = vmatpush1.bf16.msra.mxu0 0
        %441 = vmatprep.subr.bf16.mxu0 0
        %442 = vmatpush1.bf16.msra.mxu0 0
        %443 = vmatprep.subr.bf16.mxu0 0
        %444 = vmatpush1.bf16.msra.mxu0 0
        %445 = vmatprep.subr.bf16.mxu0 0
        %446 = vmatpush1.bf16.msra.mxu0 0
        %447 = vmatprep.subr.bf16.mxu0 0
        %448 = vmatpush1.bf16.msra.mxu0 0
        %449 = vmatprep.subr.bf16.mxu0 0
        %450 = vmatpush1.bf16.msra.mxu0 0
        %451 = vmatprep.subr.bf16.mxu0 0
        %452 = vmatpush1.bf16.msra.mxu0 0
        %453 = vmatprep.subr.bf16.mxu0 0
        %454 = vmatpush1.bf16.msra.mxu0 0
        %455 = vmatprep.subr.bf16.mxu0 0
        %456 = vmatpush1.bf16.msra.mxu0 0
        %457 = vmatprep.subr.bf16.mxu0 0
        %458 = vmatpush1.bf16.msra.mxu0 0
        %459 = vmatprep.subr.bf16.mxu0 0
        %460 = vmatpush1.bf16.msra.mxu0 0
        %461 = vmatprep.subr.bf16.mxu0 0
        %462 = vmatpush1.bf16.msra.mxu0 0
        %463 = vmatprep.subr.bf16.mxu0 0
        %464 = vmatpush1.bf16.msra.mxu0 0
        %465 = vmatprep.mubr.bf16.mxu0 0
        %466 = vmatmul.mubr.bf16.gmra.mrb[0].mxu0 %v410
        %v467 = vpop.f32.mrb[0].mxu0
        %v468 = vadd.f32 %v391, %v467
        %v469 = vpop.f32.mrb[0].mxu0
        %v470 = vadd.f32 %v395, %v469
        %v471 = vpop.f32.mrb[0].mxu0
        %v472 = vadd.f32 %v391, %v471
        %v473 = vpop.f32.mrb[0].mxu0
        %v474 = vadd.f32 %v395, %v473
        %475 = vmatprep.mubr.bf16.mxu0 0
        %476 = vmatmul.mubr.bf16.gmra.mrb[0].mxu0 %v413
        %v477 = vpop.f32.mrb[0].mxu0
        %v478 = vadd.f32 %v391, %v477
        %v479 = vpop.f32.mrb[0].mxu0
        %v480 = vadd.f32 %v395, %v479
        %v481 = vpop.f32.mrb[0].mxu0
        %v482 = vadd.f32 %v391, %v481
        %v483 = vpop.f32.mrb[0].mxu0
        %v484 = vadd.f32 %v395, %v483
        %485 = vmatprep.mubr.bf16.mxu0 0
        %486 = vmatmul.mubr.bf16.gmra.mrb[0].mxu0 %v416
        %v487 = vpop.f32.mrb[0].mxu0
        %v488 = vadd.f32 %v391, %v487
        %v489 = vpop.f32.mrb[0].mxu0
        %v490 = vadd.f32 %v395, %v489
        %v491 = vpop.f32.mrb[0].mxu0
        %v492 = vadd.f32 %v391, %v491
        %v493 = vpop.f32.mrb[0].mxu0
        %v494 = vadd.f32 %v395, %v493
        %495 = vmatprep.mubr.bf16.mxu0 0
        %496 = vmatmul.mubr.bf16.gmra.mrb[0].mxu0 %v419
        %v497 = vpop.f32.mrb[0].mxu0
        %v498 = vadd.f32 %v391, %v497
        %v499 = vpop.f32.mrb[0].mxu0
        %v500 = vadd.f32 %v395, %v499
        %v501 = vpop.f32.mrb[0].mxu0
        %v502 = vadd.f32 %v391, %v501
        %v503 = vpop.f32.mrb[0].mxu0
        %v504 = vadd.f32 %v395, %v503
        %505 = vmatprep.mubr.bf16.mxu0 0
        %506 = vmatmul.mubr.bf16.gmra.mrb[0].mxu0 %v422
        %v507 = vpop.f32.mrb[0].mxu0
        %v508 = vadd.f32 %v391, %v507
        %v509 = vpop.f32.mrb[0].mxu0
        %v510 = vadd.f32 %v395, %v509
        %v511 = vpop.f32.mrb[0].mxu0
        %v512 = vadd.f32 %v391, %v511
        %v513 = vpop.f32.mrb[0].mxu0
        %v514 = vadd.f32 %v395, %v513
        %515 = vmatprep.mubr.bf16.mxu0 0
        %516 = vmatmul.mubr.bf16.gmra.mrb[0].mxu0 %v425
        %v517 = vpop.f32.mrb[0].mxu0
        %v518 = vadd.f32 %v391, %v517
        %v519 = vpop.f32.mrb[0].mxu0
        %v520 = vadd.f32 %v395, %v519
        %v521 = vpop.f32.mrb[0].mxu0
        %v522 = vadd.f32 %v391, %v521
        %v523 = vpop.f32.mrb[0].mxu0
        %v524 = vadd.f32 %v395, %v523
        %525 = vmatprep.mubr.bf16.mxu0 0
        %526 = vmatmul.mubr.bf16.gmra.mrb[0].mxu0 %v428
        %v527 = vpop.f32.mrb[0].mxu0
        %v528 = vadd.f32 %v391, %v527
        %v529 = vpop.f32.mrb[0].mxu0
        %v530 = vadd.f32 %v395, %v529
        %v531 = vpop.f32.mrb[0].mxu0
        %v532 = vadd.f32 %v391, %v531
        %v533 = vpop.f32.mrb[0].mxu0
        %v534 = vadd.f32 %v395, %v533
        %535 = vmatprep.mubr.bf16.mxu0 0
        %536 = vmatmul.mubr.bf16.gmra.mrb[0].mxu0 %v431
        %v537 = vpop.f32.mrb[0].mxu0
        %v538 = vadd.f32 %v391, %v537
        %v539 = vpop.f32.mrb[0].mxu0
        %v540 = vadd.f32 %v395, %v539
        %v541 = vpop.f32.mrb[0].mxu0
        %v542 = vadd.f32 %v391, %v541
        %v543 = vpop.f32.mrb[0].mxu0
        %v544 = vadd.f32 %v395, %v543
        %545 = vdwg.mxu0
        %v546 = vmax.f32 %v468, 0.0
        %v547 = vmax.f32 %v470, 0.0
        %v548 = vmax.f32 %v472, 0.0
        %v549 = vmax.f32 %v474, 0.0
        %v550 = vmax.f32 %v478, 0.0
        %v551 = vmax.f32 %v480, 0.0
        %v552 = vmax.f32 %v482, 0.0
        %v553 = vmax.f32 %v484, 0.0
        %v554 = vmax.f32 %v488, 0.0
        %v555 = vmax.f32 %v490, 0.0
        %v556 = vmax.f32 %v492, 0.0
        %v557 = vmax.f32 %v494, 0.0
        %v558 = vmax.f32 %v498, 0.0
        %v559 = vmax.f32 %v500, 0.0
        %v560 = vmax.f32 %v502, 0.0
        %v561 = vmax.f32 %v504, 0.0
        %v562 = vmax.f32 %v508, 0.0
        %v563 = vmax.f32 %v510, 0.0
        %v564 = vmax.f32 %v512, 0.0
        %v565 = vmax.f32 %v514, 0.0
        %v566 = vmax.f32 %v518, 0.0
        %v567 = vmax.f32 %v520, 0.0
        %v568 = vmax.f32 %v522, 0.0
        %v569 = vmax.f32 %v524, 0.0
        %v570 = vmax.f32 %v528, 0.0
        %v571 = vmax.f32 %v530, 0.0
        %v572 = vmax.f32 %v532, 0.0
        %v573 = vmax.f32 %v534, 0.0
        %v574 = vmax.f32 %v538, 0.0
        %v575 = vmax.f32 %v540, 0.0
        %v576 = vmax.f32 %v542, 0.0
        %v577 = vmax.f32 %v544, 0.0
        %v578 = vpack.c.bf16 %v548, %v546
        %v579 = vpack.c.bf16 %v549, %v547
        %v580 = vpack.c.bf16 %v552, %v550
        %v581 = vpack.c.bf16 %v553, %v551
        %v582 = vpack.c.bf16 %v556, %v554
        %v583 = vpack.c.bf16 %v557, %v555
        %v584 = vpack.c.bf16 %v560, %v558
        %v585 = vpack.c.bf16 %v561, %v559
        %v586 = vpack.c.bf16 %v564, %v562
        %v587 = vpack.c.bf16 %v565, %v563
        %v588 = vpack.c.bf16 %v568, %v566
        %v589 = vpack.c.bf16 %v569, %v567
        %v590 = vpack.c.bf16 %v572, %v570
        %v591 = vpack.c.bf16 %v573, %v571
        %v592 = vpack.c.bf16 %v576, %v574
        %v593 = vpack.c.bf16 %v577, %v575
        %v594 = vld [vmem:[#allocation2] sm:$0xff]
        %v595 = vld [vmem:[#allocation2 + $0x8] sm:$0xff]
        %v596 = vld [vmem:[#allocation2 + $0x10] sm:$0xff]
        %v597 = vld [vmem:[#allocation2 + $0x18] sm:$0xff]
        %v598 = vld [vmem:[#allocation2 + $0x20] sm:$0xff]
        %v599 = vld [vmem:[#allocation2 + $0x28] sm:$0xff]
        %v600 = vld [vmem:[#allocation2 + $0x30] sm:$0xff]
        %v601 = vld [vmem:[#allocation2 + $0x38] sm:$0xff]
        %v602 = vld [vmem:[#allocation2 + $0x40] sm:$0xff]
        %v603 = vld [vmem:[#allocation2 + $0x48] sm:$0xff]
        %v604 = vld [vmem:[#allocation2 + $0x50] sm:$0xff]
        %v605 = vld [vmem:[#allocation2 + $0x58] sm:$0xff]
        %v606 = vld [vmem:[#allocation2 + $0x60] sm:$0xff]
        %v607 = vld [vmem:[#allocation2 + $0x68] sm:$0xff]
        %v608 = vld [vmem:[#allocation2 + $0x70] sm:$0xff]
        %v609 = vld [vmem:[#allocation2 + $0x78] sm:$0xff]
        %v610 = vld [vmem:[#allocation2 + $0x80] sm:$0xff]
        %v611 = vld [vmem:[#allocation2 + $0x88] sm:$0xff]
        %v612 = vld [vmem:[#allocation2 + $0x90] sm:$0xff]
        %v613 = vld [vmem:[#allocation2 + $0x98] sm:$0xff]
        %v614 = vld [vmem:[#allocation2 + $0xa0] sm:$0xff]
        %v615 = vld [vmem:[#allocation2 + $0xa8] sm:$0xff]
        %v616 = vld [vmem:[#allocation2 + $0xb0] sm:$0xff]
        %v617 = vld [vmem:[#allocation2 + $0xb8] sm:$0xff]
        %v618 = vld [vmem:[#allocation2 + $0xc0] sm:$0xff]
        %v619 = vld [vmem:[#allocation2 + $0xc8] sm:$0xff]
        %v620 = vld [vmem:[#allocation2 + $0xd0] sm:$0xff]
        %v621 = vld [vmem:[#allocation2 + $0xd8] sm:$0xff]
        %v622 = vld [vmem:[#allocation2 + $0xe0] sm:$0xff]
        %v623 = vld [vmem:[#allocation2 + $0xe8] sm:$0xff]
        %v624 = vld [vmem:[#allocation2 + $0xf0] sm:$0xff]
        %v625 = vld [vmem:[#allocation2 + $0xf8] sm:$0xff]
        %v626 = vld [vmem:[%s5] sm:$0x3]
        %v628 = vlaneseq
        %v629 = vshrl.u32 %v628, 7
        %v630 = vsub.s32 0, %v629
        %v631 = vrot.slane %v626, %v630
        %v632 = vlaneseq
        %v633 = vshrl.u32 %v632, 7
        %v634 = vsub.s32 1, %v633
        %v635 = vrot.slane %v626, %v634
        %v670 = vunpack.c.l.b16 %v594
        %v671 = vunpack.c.h.b16 %v594
        %v672 = vunpack.c.l.b16 %v595
        %v673 = vunpack.c.h.b16 %v595
        %v674 = vunpack.c.l.b16 %v596
        %v675 = vunpack.c.h.b16 %v596
        %v676 = vunpack.c.l.b16 %v597
        %v677 = vunpack.c.h.b16 %v597
        %v678 = vunpack.c.l.b16 %v598
        %v679 = vunpack.c.h.b16 %v598
        %v680 = vunpack.c.l.b16 %v599
        %v681 = vunpack.c.h.b16 %v599
        %v682 = vunpack.c.l.b16 %v600
        %v683 = vunpack.c.h.b16 %v600
        %v684 = vunpack.c.l.b16 %v601
        %v685 = vunpack.c.h.b16 %v601
        %v686 = vunpack.c.l.b16 %v602
        %v687 = vunpack.c.h.b16 %v602
        %v688 = vunpack.c.l.b16 %v603
        %v689 = vunpack.c.h.b16 %v603
        %v690 = vunpack.c.l.b16 %v604
        %v691 = vunpack.c.h.b16 %v604
        %v692 = vunpack.c.l.b16 %v605
        %v693 = vunpack.c.h.b16 %v605
        %v694 = vunpack.c.l.b16 %v606
        %v695 = vunpack.c.h.b16 %v606
        %v696 = vunpack.c.l.b16 %v607
        %v697 = vunpack.c.h.b16 %v607
        %v698 = vunpack.c.l.b16 %v608
        %v699 = vunpack.c.h.b16 %v608
        %v700 = vunpack.c.l.b16 %v609
        %v701 = vunpack.c.h.b16 %v609
        %v702 = vunpack.c.l.b16 %v610
        %v703 = vunpack.c.h.b16 %v610
        %v704 = vunpack.c.l.b16 %v611
        %v705 = vunpack.c.h.b16 %v611
        %v706 = vunpack.c.l.b16 %v612
        %v707 = vunpack.c.h.b16 %v612
        %v708 = vunpack.c.l.b16 %v613
        %v709 = vunpack.c.h.b16 %v613
        %v710 = vunpack.c.l.b16 %v614
        %v711 = vunpack.c.h.b16 %v614
        %v712 = vunpack.c.l.b16 %v615
        %v713 = vunpack.c.h.b16 %v615
        %v714 = vunpack.c.l.b16 %v616
        %v715 = vunpack.c.h.b16 %v616
        %v716 = vunpack.c.l.b16 %v617
        %v717 = vunpack.c.h.b16 %v617
        %v718 = vunpack.c.l.b16 %v618
        %v719 = vunpack.c.h.b16 %v618
        %v720 = vunpack.c.l.b16 %v619
        %v721 = vunpack.c.h.b16 %v619
        %v722 = vunpack.c.l.b16 %v620
        %v723 = vunpack.c.h.b16 %v620
        %v724 = vunpack.c.l.b16 %v621
        %v725 = vunpack.c.h.b16 %v621
        %v726 = vunpack.c.l.b16 %v622
        %v727 = vunpack.c.h.b16 %v622
        %v728 = vunpack.c.l.b16 %v623
        %v729 = vunpack.c.h.b16 %v623
        %v730 = vunpack.c.l.b16 %v624
        %v731 = vunpack.c.h.b16 %v624
        %v732 = vunpack.c.l.b16 %v625
        %v733 = vunpack.c.h.b16 %v625
        %v734 = vpack.c.b16 %v672, %v670
        %v735 = vpack.c.b16 %v673, %v671
        %v736 = vpack.c.b16 %v676, %v674
        %v737 = vpack.c.b16 %v677, %v675
        %v738 = vpack.c.b16 %v680, %v678
        %v739 = vpack.c.b16 %v681, %v679
        %v740 = vpack.c.b16 %v684, %v682
        %v741 = vpack.c.b16 %v685, %v683
        %v742 = vpack.c.b16 %v688, %v686
        %v743 = vpack.c.b16 %v689, %v687
        %v744 = vpack.c.b16 %v692, %v690
        %v745 = vpack.c.b16 %v693, %v691
        %v746 = vpack.c.b16 %v696, %v694
        %v747 = vpack.c.b16 %v697, %v695
        %v748 = vpack.c.b16 %v700, %v698
        %v749 = vpack.c.b16 %v701, %v699
        %v750 = vpack.c.b16 %v704, %v702
        %v751 = vpack.c.b16 %v705, %v703
        %v752 = vpack.c.b16 %v708, %v706
        %v753 = vpack.c.b16 %v709, %v707
        %v754 = vpack.c.b16 %v712, %v710
        %v755 = vpack.c.b16 %v713, %v711
        %v756 = vpack.c.b16 %v716, %v714
        %v757 = vpack.c.b16 %v717, %v715
        %v758 = vpack.c.b16 %v720, %v718
        %v759 = vpack.c.b16 %v721, %v719
        %v760 = vpack.c.b16 %v724, %v722
        %v761 = vpack.c.b16 %v725, %v723
        %v762 = vpack.c.b16 %v728, %v726
        %v763 = vpack.c.b16 %v729, %v727
        %v764 = vpack.c.b16 %v732, %v730
        %v765 = vpack.c.b16 %v733, %v731
        %798 = vmatprep.subr.bf16.mxu0 %v735
        %799 = vmatpush1.bf16.msra.mxu0 %v734
        %800 = vmatprep.subr.bf16.mxu0 %v737
        %801 = vmatpush1.bf16.msra.mxu0 %v736
        %802 = vmatprep.subr.bf16.mxu0 %v739
        %803 = vmatpush1.bf16.msra.mxu0 %v738
        %804 = vmatprep.subr.bf16.mxu0 %v741
        %805 = vmatpush1.bf16.msra.mxu0 %v740
        %806 = vmatprep.subr.bf16.mxu0 %v743
        %807 = vmatpush1.bf16.msra.mxu0 %v742
        %808 = vmatprep.subr.bf16.mxu0 %v745
        %809 = vmatpush1.bf16.msra.mxu0 %v744
        %810 = vmatprep.subr.bf16.mxu0 %v747
        %811 = vmatpush1.bf16.msra.mxu0 %v746
        %812 = vmatprep.subr.bf16.mxu0 %v749
        %813 = vmatpush1.bf16.msra.mxu0 %v748
        %814 = vmatprep.subr.bf16.mxu0 %v751
        %815 = vmatpush1.bf16.msra.mxu0 %v750
        %816 = vmatprep.subr.bf16.mxu0 %v753
        %817 = vmatpush1.bf16.msra.mxu0 %v752
        %818 = vmatprep.subr.bf16.mxu0 %v755
        %819 = vmatpush1.bf16.msra.mxu0 %v754
        %820 = vmatprep.subr.bf16.mxu0 %v757
        %821 = vmatpush1.bf16.msra.mxu0 %v756
        %822 = vmatprep.subr.bf16.mxu0 %v759
        %823 = vmatpush1.bf16.msra.mxu0 %v758
        %824 = vmatprep.subr.bf16.mxu0 %v761
        %825 = vmatpush1.bf16.msra.mxu0 %v760
        %826 = vmatprep.subr.bf16.mxu0 %v763
        %827 = vmatpush1.bf16.msra.mxu0 %v762
        %828 = vmatprep.subr.bf16.mxu0 %v765
        %829 = vmatpush1.bf16.msra.mxu0 %v764
        %830 = vmatprep.mubr.bf16.mxu0 %v579
        %831 = vmatmul.mubr.bf16.gmra.mrb[0].mxu0 %v578
        %v832 = vpop.f32.mrb[0].mxu0
        %v833 = vadd.f32 %v631, %v832
        %v834 = vpop.f32.mrb[0].mxu0
        %v835 = vadd.f32 %v635, %v834
        %v836 = vpop.f32.mrb[0].mxu0
        %v837 = vadd.f32 %v631, %v836
        %v838 = vpop.f32.mrb[0].mxu0
        %v839 = vadd.f32 %v635, %v838
        %840 = vmatprep.mubr.bf16.mxu0 %v581
        %841 = vmatmul.mubr.bf16.gmra.mrb[0].mxu0 %v580
        %v842 = vpop.f32.mrb[0].mxu0
        %v843 = vadd.f32 %v631, %v842
        %v844 = vpop.f32.mrb[0].mxu0
        %v845 = vadd.f32 %v635, %v844
        %v846 = vpop.f32.mrb[0].mxu0
        %v847 = vadd.f32 %v631, %v846
        %v848 = vpop.f32.mrb[0].mxu0
        %v849 = vadd.f32 %v635, %v848
        %850 = vmatprep.mubr.bf16.mxu0 %v583
        %851 = vmatmul.mubr.bf16.gmra.mrb[0].mxu0 %v582
        %v852 = vpop.f32.mrb[0].mxu0
        %v853 = vadd.f32 %v631, %v852
        %v854 = vpop.f32.mrb[0].mxu0
        %v855 = vadd.f32 %v635, %v854
        %v856 = vpop.f32.mrb[0].mxu0
        %v857 = vadd.f32 %v631, %v856
        %v858 = vpop.f32.mrb[0].mxu0
        %v859 = vadd.f32 %v635, %v858
        %860 = vmatprep.mubr.bf16.mxu0 %v585
        %861 = vmatmul.mubr.bf16.gmra.mrb[0].mxu0 %v584
        %v862 = vpop.f32.mrb[0].mxu0
        %v863 = vadd.f32 %v631, %v862
        %v864 = vpop.f32.mrb[0].mxu0
        %v865 = vadd.f32 %v635, %v864
        %v866 = vpop.f32.mrb[0].mxu0
        %v867 = vadd.f32 %v631, %v866
        %v868 = vpop.f32.mrb[0].mxu0
        %v869 = vadd.f32 %v635, %v868
        %870 = vmatprep.mubr.bf16.mxu0 %v587
        %871 = vmatmul.mubr.bf16.gmra.mrb[0].mxu0 %v586
        %v872 = vpop.f32.mrb[0].mxu0
        %v873 = vadd.f32 %v631, %v872
        %v874 = vpop.f32.mrb[0].mxu0
        %v875 = vadd.f32 %v635, %v874
        %v876 = vpop.f32.mrb[0].mxu0
        %v877 = vadd.f32 %v631, %v876
        %v878 = vpop.f32.mrb[0].mxu0
        %v879 = vadd.f32 %v635, %v878
        %880 = vmatprep.mubr.bf16.mxu0 %v589
        %881 = vmatmul.mubr.bf16.gmra.mrb[0].mxu0 %v588
        %v882 = vpop.f32.mrb[0].mxu0
        %v883 = vadd.f32 %v631, %v882
        %v884 = vpop.f32.mrb[0].mxu0
        %v885 = vadd.f32 %v635, %v884
        %v886 = vpop.f32.mrb[0].mxu0
        %v887 = vadd.f32 %v631, %v886
        %v888 = vpop.f32.mrb[0].mxu0
        %v889 = vadd.f32 %v635, %v888
        %890 = vmatprep.mubr.bf16.mxu0 %v591
        %891 = vmatmul.mubr.bf16.gmra.mrb[0].mxu0 %v590
        %v892 = vpop.f32.mrb[0].mxu0
        %v893 = vadd.f32 %v631, %v892
        %v894 = vpop.f32.mrb[0].mxu0
        %v895 = vadd.f32 %v635, %v894
        %v896 = vpop.f32.mrb[0].mxu0
        %v897 = vadd.f32 %v631, %v896
        %v898 = vpop.f32.mrb[0].mxu0
        %v899 = vadd.f32 %v635, %v898
        %900 = vmatprep.mubr.bf16.mxu0 %v593
        %901 = vmatmul.mubr.bf16.gmra.mrb[0].mxu0 %v592
        %v902 = vpop.f32.mrb[0].mxu0
        %v903 = vadd.f32 %v631, %v902
        %v904 = vpop.f32.mrb[0].mxu0
        %v905 = vadd.f32 %v635, %v904
        %v906 = vpop.f32.mrb[0].mxu0
        %v907 = vadd.f32 %v631, %v906
        %v908 = vpop.f32.mrb[0].mxu0
        %v909 = vadd.f32 %v635, %v908
        %910 = vdwg.mxu0
        %v911 = vmax.f32 %v833, 0.0
        %v912 = vmax.f32 %v835, 0.0
        %v913 = vmax.f32 %v837, 0.0
        %v914 = vmax.f32 %v839, 0.0
        %v915 = vmax.f32 %v843, 0.0
        %v916 = vmax.f32 %v845, 0.0
        %v917 = vmax.f32 %v847, 0.0
        %v918 = vmax.f32 %v849, 0.0
        %v919 = vmax.f32 %v853, 0.0
        %v920 = vmax.f32 %v855, 0.0
        %v921 = vmax.f32 %v857, 0.0
        %v922 = vmax.f32 %v859, 0.0
        %v923 = vmax.f32 %v863, 0.0
        %v924 = vmax.f32 %v865, 0.0
        %v925 = vmax.f32 %v867, 0.0
        %v926 = vmax.f32 %v869, 0.0
        %v927 = vmax.f32 %v873, 0.0
        %v928 = vmax.f32 %v875, 0.0
        %v929 = vmax.f32 %v877, 0.0
        %v930 = vmax.f32 %v879, 0.0
        %v931 = vmax.f32 %v883, 0.0
        %v932 = vmax.f32 %v885, 0.0
        %v933 = vmax.f32 %v887, 0.0
        %v934 = vmax.f32 %v889, 0.0
        %v935 = vmax.f32 %v893, 0.0
        %v936 = vmax.f32 %v895, 0.0
        %v937 = vmax.f32 %v897, 0.0
        %v938 = vmax.f32 %v899, 0.0
        %v939 = vmax.f32 %v903, 0.0
        %v940 = vmax.f32 %v905, 0.0
        %v941 = vmax.f32 %v907, 0.0
        %v942 = vmax.f32 %v909, 0.0
        %v943 = vpack.c.bf16 %v913, %v911
        %v944 = vpack.c.bf16 %v914, %v912
        %v945 = vpack.c.bf16 %v917, %v915
        %v946 = vpack.c.bf16 %v918, %v916
        %v947 = vpack.c.bf16 %v921, %v919
        %v948 = vpack.c.bf16 %v922, %v920
        %v949 = vpack.c.bf16 %v925, %v923
        %v950 = vpack.c.bf16 %v926, %v924
        %v951 = vpack.c.bf16 %v929, %v927
        %v952 = vpack.c.bf16 %v930, %v928
        %v953 = vpack.c.bf16 %v933, %v931
        %v954 = vpack.c.bf16 %v934, %v932
        %v955 = vpack.c.bf16 %v937, %v935
        %v956 = vpack.c.bf16 %v938, %v936
        %v957 = vpack.c.bf16 %v941, %v939
        %v958 = vpack.c.bf16 %v942, %v940
        %v959 = vld [vmem:[#allocation5] sm:$0xf]
        %v960 = vld [vmem:[#allocation5 + $0x4] sm:$0xf]
        %v961 = vld [vmem:[#allocation5 + $0x8] sm:$0xf]
        %v962 = vld [vmem:[#allocation5 + $0xc] sm:$0xf]
        %v963 = vld [vmem:[#allocation5 + $0x10] sm:$0xf]
        %v964 = vld [vmem:[#allocation5 + $0x14] sm:$0xf]
        %v965 = vld [vmem:[#allocation5 + $0x18] sm:$0xf]
        %v966 = vld [vmem:[#allocation5 + $0x1c] sm:$0xf]
        %v967 = vld [vmem:[#allocation5 + $0x20] sm:$0xf]
        %v968 = vld [vmem:[#allocation5 + $0x24] sm:$0xf]
        %v969 = vld [vmem:[#allocation5 + $0x28] sm:$0xf]
        %v970 = vld [vmem:[#allocation5 + $0x2c] sm:$0xf]
        %v971 = vld [vmem:[#allocation5 + $0x30] sm:$0xf]
        %v972 = vld [vmem:[#allocation5 + $0x34] sm:$0xf]
        %v973 = vld [vmem:[#allocation5 + $0x38] sm:$0xf]
        %v974 = vld [vmem:[#allocation5 + $0x3c] sm:$0xf]
        %v975 = vld [vmem:[#allocation5 + $0x40] sm:$0xf]
        %v976 = vld [vmem:[#allocation5 + $0x44] sm:$0xf]
        %v977 = vld [vmem:[#allocation5 + $0x48] sm:$0xf]
        %v978 = vld [vmem:[#allocation5 + $0x4c] sm:$0xf]
        %v979 = vld [vmem:[#allocation5 + $0x50] sm:$0xf]
        %v980 = vld [vmem:[#allocation5 + $0x54] sm:$0xf]
        %v981 = vld [vmem:[#allocation5 + $0x58] sm:$0xf]
        %v982 = vld [vmem:[#allocation5 + $0x5c] sm:$0xf]
        %v983 = vld [vmem:[#allocation5 + $0x60] sm:$0xf]
        %v984 = vld [vmem:[#allocation5 + $0x64] sm:$0xf]
        %v985 = vld [vmem:[#allocation5 + $0x68] sm:$0xf]
        %v986 = vld [vmem:[#allocation5 + $0x6c] sm:$0xf]
        %v987 = vld [vmem:[#allocation5 + $0x70] sm:$0xf]
        %v988 = vld [vmem:[#allocation5 + $0x74] sm:$0xf]
        %v989 = vld [vmem:[#allocation5 + $0x78] sm:$0xf]
        %v990 = vld [vmem:[#allocation5 + $0x7c] sm:$0xf]
        %v991 = vld [vmem:[%s7] sm:$0x1]
        %v993 = vlaneseq
        %v994 = vshrl.u32 %v993, 7
        %v995 = vsub.s32 0, %v994
        %v996 = vrot.slane %v991, %v995
        %v1030 = vunpack.c.l.b16 %v959
        %v1031 = vunpack.c.l.b16 %v960
        %v1032 = vunpack.c.l.b16 %v961
        %v1033 = vunpack.c.l.b16 %v962
        %v1034 = vunpack.c.l.b16 %v963
        %v1035 = vunpack.c.l.b16 %v964
        %v1036 = vunpack.c.l.b16 %v965
        %v1037 = vunpack.c.l.b16 %v966
        %v1038 = vunpack.c.l.b16 %v967
        %v1039 = vunpack.c.l.b16 %v968
        %v1040 = vunpack.c.l.b16 %v969
        %v1041 = vunpack.c.l.b16 %v970
        %v1042 = vunpack.c.l.b16 %v971
        %v1043 = vunpack.c.l.b16 %v972
        %v1044 = vunpack.c.l.b16 %v973
        %v1045 = vunpack.c.l.b16 %v974
        %v1046 = vunpack.c.l.b16 %v975
        %v1047 = vunpack.c.l.b16 %v976
        %v1048 = vunpack.c.l.b16 %v977
        %v1049 = vunpack.c.l.b16 %v978
        %v1050 = vunpack.c.l.b16 %v979
        %v1051 = vunpack.c.l.b16 %v980
        %v1052 = vunpack.c.l.b16 %v981
        %v1053 = vunpack.c.l.b16 %v982
        %v1054 = vunpack.c.l.b16 %v983
        %v1055 = vunpack.c.l.b16 %v984
        %v1056 = vunpack.c.l.b16 %v985
        %v1057 = vunpack.c.l.b16 %v986
        %v1058 = vunpack.c.l.b16 %v987
        %v1059 = vunpack.c.l.b16 %v988
        %v1060 = vunpack.c.l.b16 %v989
        %v1061 = vunpack.c.l.b16 %v990
        %v1062 = vpack.c.b16 %v1031, %v1030
        %v1063 = vpack.c.b16 %v1033, %v1032
        %v1064 = vpack.c.b16 %v1035, %v1034
        %v1065 = vpack.c.b16 %v1037, %v1036
        %v1066 = vpack.c.b16 %v1039, %v1038
        %v1067 = vpack.c.b16 %v1041, %v1040
        %v1068 = vpack.c.b16 %v1043, %v1042
        %v1069 = vpack.c.b16 %v1045, %v1044
        %v1070 = vpack.c.b16 %v1047, %v1046
        %v1071 = vpack.c.b16 %v1049, %v1048
        %v1072 = vpack.c.b16 %v1051, %v1050
        %v1073 = vpack.c.b16 %v1053, %v1052
        %v1074 = vpack.c.b16 %v1055, %v1054
        %v1075 = vpack.c.b16 %v1057, %v1056
        %v1076 = vpack.c.b16 %v1059, %v1058
        %v1077 = vpack.c.b16 %v1061, %v1060
        %1094 = vmatprep.subr.bf16.mxu0 0
        %1095 = vmatpush1.bf16.msra.mxu0 %v1062
        %1096 = vmatprep.subr.bf16.mxu0 0
        %1097 = vmatpush1.bf16.msra.mxu0 %v1063
        %1098 = vmatprep.subr.bf16.mxu0 0
        %1099 = vmatpush1.bf16.msra.mxu0 %v1064
        %1100 = vmatprep.subr.bf16.mxu0 0
        %1101 = vmatpush1.bf16.msra.mxu0 %v1065
        %1102 = vmatprep.subr.bf16.mxu0 0
        %1103 = vmatpush1.bf16.msra.mxu0 %v1066
        %1104 = vmatprep.subr.bf16.mxu0 0
        %1105 = vmatpush1.bf16.msra.mxu0 %v1067
        %1106 = vmatprep.subr.bf16.mxu0 0
        %1107 = vmatpush1.bf16.msra.mxu0 %v1068
        %1108 = vmatprep.subr.bf16.mxu0 0
        %1109 = vmatpush1.bf16.msra.mxu0 %v1069
        %1110 = vmatprep.subr.bf16.mxu0 0
        %1111 = vmatpush1.bf16.msra.mxu0 %v1070
        %1112 = vmatprep.subr.bf16.mxu0 0
        %1113 = vmatpush1.bf16.msra.mxu0 %v1071
        %1114 = vmatprep.subr.bf16.mxu0 0
        %1115 = vmatpush1.bf16.msra.mxu0 %v1072
        %1116 = vmatprep.subr.bf16.mxu0 0
        %1117 = vmatpush1.bf16.msra.mxu0 %v1073
        %1118 = vmatprep.subr.bf16.mxu0 0
        %1119 = vmatpush1.bf16.msra.mxu0 %v1074
        %1120 = vmatprep.subr.bf16.mxu0 0
        %1121 = vmatpush1.bf16.msra.mxu0 %v1075
        %1122 = vmatprep.subr.bf16.mxu0 0
        %1123 = vmatpush1.bf16.msra.mxu0 %v1076
        %1124 = vmatprep.subr.bf16.mxu0 0
        %1125 = vmatpush1.bf16.msra.mxu0 %v1077
        %1126 = vmatprep.mubr.bf16.mxu0 %v944
        %1127 = vmatmul.mubr.bf16.gmra.mrb[0].mxu0 %v943
        %v1128 = vpop.f32.mrb[0].mxu0
        %v1129 = vadd.f32 %v996, %v1128
        %v1130 = vpop.f32.mrb[0].mxu0
        %v1131 = vpop.f32.mrb[0].mxu0
        %v1132 = vadd.f32 %v996, %v1131
        %v1133 = vpop.f32.mrb[0].mxu0
        %1134 = vmatprep.mubr.bf16.mxu0 %v946
        %1135 = vmatmul.mubr.bf16.gmra.mrb[0].mxu0 %v945
        %v1136 = vpop.f32.mrb[0].mxu0
        %v1137 = vadd.f32 %v996, %v1136
        %v1138 = vpop.f32.mrb[0].mxu0
        %v1139 = vpop.f32.mrb[0].mxu0
        %v1140 = vadd.f32 %v996, %v1139
        %v1141 = vpop.f32.mrb[0].mxu0
        %1142 = vmatprep.mubr.bf16.mxu0 %v948
        %1143 = vmatmul.mubr.bf16.gmra.mrb[0].mxu0 %v947
        %v1144 = vpop.f32.mrb[0].mxu0
        %v1145 = vadd.f32 %v996, %v1144
        %v1146 = vpop.f32.mrb[0].mxu0
        %v1147 = vpop.f32.mrb[0].mxu0
        %v1148 = vadd.f32 %v996, %v1147
        %v1149 = vpop.f32.mrb[0].mxu0
        %1150 = vmatprep.mubr.bf16.mxu0 %v950
        %1151 = vmatmul.mubr.bf16.gmra.mrb[0].mxu0 %v949
        %v1152 = vpop.f32.mrb[0].mxu0
        %v1153 = vadd.f32 %v996, %v1152
        %v1154 = vpop.f32.mrb[0].mxu0
        %v1155 = vpop.f32.mrb[0].mxu0
        %v1156 = vadd.f32 %v996, %v1155
        %v1157 = vpop.f32.mrb[0].mxu0
        %1158 = vmatprep.mubr.bf16.mxu0 %v952
        %1159 = vmatmul.mubr.bf16.gmra.mrb[0].mxu0 %v951
        %v1160 = vpop.f32.mrb[0].mxu0
        %v1161 = vadd.f32 %v996, %v1160
        %v1162 = vpop.f32.mrb[0].mxu0
        %v1163 = vpop.f32.mrb[0].mxu0
        %v1164 = vadd.f32 %v996, %v1163
        %v1165 = vpop.f32.mrb[0].mxu0
        %1166 = vmatprep.mubr.bf16.mxu0 %v954
        %1167 = vmatmul.mubr.bf16.gmra.mrb[0].mxu0 %v953
        %v1168 = vpop.f32.mrb[0].mxu0
        %v1169 = vadd.f32 %v996, %v1168
        %v1170 = vpop.f32.mrb[0].mxu0
        %v1171 = vpop.f32.mrb[0].mxu0
        %v1172 = vadd.f32 %v996, %v1171
        %v1173 = vpop.f32.mrb[0].mxu0
        %1174 = vmatprep.mubr.bf16.mxu0 %v956
        %1175 = vmatmul.mubr.bf16.gmra.mrb[0].mxu0 %v955
        %v1176 = vpop.f32.mrb[0].mxu0
        %v1177 = vadd.f32 %v996, %v1176
        %v1178 = vpop.f32.mrb[0].mxu0
        %v1179 = vpop.f32.mrb[0].mxu0
        %v1180 = vadd.f32 %v996, %v1179
        %v1181 = vpop.f32.mrb[0].mxu0
        %1182 = vmatprep.mubr.bf16.mxu0 %v958
        %1183 = vmatmul.mubr.bf16.gmra.mrb[0].mxu0 %v957
        %v1184 = vpop.f32.mrb[0].mxu0
        %v1185 = vadd.f32 %v996, %v1184
        %v1186 = vpop.f32.mrb[0].mxu0
        %v1187 = vpop.f32.mrb[0].mxu0
        %v1188 = vadd.f32 %v996, %v1187
        %v1189 = vpop.f32.mrb[0].mxu0
        %1190 = vdwg.mxu0
        %v1191 = vlaneseq
        %v1192 = vand.u32 %v1191, 127
        %vm1193 = vcmp.lt.s32.totalorder %v1192, 8
        %v1194 = vsel %vm1193, %v1129, -1e+30
        %v1195 = vsel %vm1193, %v1132, -1e+30
        %v1196 = vsel %vm1193, %v1137, -1e+30
        %v1197 = vsel %vm1193, %v1140, -1e+30
        %v1198 = vsel %vm1193, %v1145, -1e+30
        %v1199 = vsel %vm1193, %v1148, -1e+30
        %v1200 = vsel %vm1193, %v1153, -1e+30
        %v1201 = vsel %vm1193, %v1156, -1e+30
        %v1202 = vsel %vm1193, %v1161, -1e+30
        %v1203 = vsel %vm1193, %v1164, -1e+30
        %v1204 = vsel %vm1193, %v1169, -1e+30
        %v1205 = vsel %vm1193, %v1172, -1e+30
        %v1206 = vsel %vm1193, %v1177, -1e+30
        %v1207 = vsel %vm1193, %v1180, -1e+30
        %v1208 = vsel %vm1193, %v1185, -1e+30
        %v1209 = vsel %vm1193, %v1188, -1e+30
        %1210 = vmax.xlane.f32.xlu0 %v1194
        %v1211 = vpop.xlane.xlu0 %1210
        %1212 = vmax.xlane.f32.xlu0 %v1195
        %v1213 = vpop.xlane.xlu0 %1212
        %1214 = vmax.xlane.f32.xlu0 %v1196
        %v1215 = vpop.xlane.xlu0 %1214
        %1216 = vmax.xlane.f32.xlu0 %v1197
        %v1217 = vpop.xlane.xlu0 %1216
        %1218 = vmax.xlane.f32.xlu0 %v1198
        %v1219 = vpop.xlane.xlu0 %1218
        %1220 = vmax.xlane.f32.xlu0 %v1199
        %v1221 = vpop.xlane.xlu0 %1220
        %1222 = vmax.xlane.f32.xlu0 %v1200
        %v1223 = vpop.xlane.xlu0 %1222
        %1224 = vmax.xlane.f32.xlu0 %v1201
        %v1225 = vpop.xlane.xlu0 %1224
        %1226 = vmax.xlane.f32.xlu0 %v1202
        %v1227 = vpop.xlane.xlu0 %1226
        %1228 = vmax.xlane.f32.xlu0 %v1203
        %v1229 = vpop.xlane.xlu0 %1228
        %1230 = vmax.xlane.f32.xlu0 %v1204
        %v1231 = vpop.xlane.xlu0 %1230
        %1232 = vmax.xlane.f32.xlu0 %v1205
        %v1233 = vpop.xlane.xlu0 %1232
        %1234 = vmax.xlane.f32.xlu0 %v1206
        %v1235 = vpop.xlane.xlu0 %1234
        %1236 = vmax.xlane.f32.xlu0 %v1207
        %v1237 = vpop.xlane.xlu0 %1236
        %1238 = vmax.xlane.f32.xlu0 %v1208
        %v1239 = vpop.xlane.xlu0 %1238
        %1240 = vmax.xlane.f32.xlu0 %v1209
        %v1241 = vpop.xlane.xlu0 %1240
        %v1242 = vsub.f32 %v1194, %v1211
        %v1243 = vsub.f32 %v1195, %v1213
        %v1244 = vsub.f32 %v1196, %v1215
        %v1245 = vsub.f32 %v1197, %v1217
        %v1246 = vsub.f32 %v1198, %v1219
        %v1247 = vsub.f32 %v1199, %v1221
        %v1248 = vsub.f32 %v1200, %v1223
        %v1249 = vsub.f32 %v1201, %v1225
        %v1250 = vsub.f32 %v1202, %v1227
        %v1251 = vsub.f32 %v1203, %v1229
        %v1252 = vsub.f32 %v1204, %v1231
        %v1253 = vsub.f32 %v1205, %v1233
        %v1254 = vsub.f32 %v1206, %v1235
        %v1255 = vsub.f32 %v1207, %v1237
        %v1256 = vsub.f32 %v1208, %v1239
        %v1257 = vsub.f32 %v1209, %v1241
        %v1258 = vmul.f32 %v1242, 1.442695
        %v1259 = vpow.pop %v1258
        %v1260 = vmul.f32 %v1243, 1.442695
        %v1261 = vpow.pop %v1260
        %v1262 = vmul.f32 %v1244, 1.442695
        %v1263 = vpow.pop %v1262
        %v1264 = vmul.f32 %v1245, 1.442695
        %v1265 = vpow.pop %v1264
        %v1266 = vmul.f32 %v1246, 1.442695
        %v1267 = vpow.pop %v1266
        %v1268 = vmul.f32 %v1247, 1.442695
        %v1269 = vpow.pop %v1268
        %v1270 = vmul.f32 %v1248, 1.442695
        %v1271 = vpow.pop %v1270
        %v1272 = vmul.f32 %v1249, 1.442695
        %v1273 = vpow.pop %v1272
        %v1274 = vmul.f32 %v1250, 1.442695
        %v1275 = vpow.pop %v1274
        %v1276 = vmul.f32 %v1251, 1.442695
        %v1277 = vpow.pop %v1276
        %v1278 = vmul.f32 %v1252, 1.442695
        %v1279 = vpow.pop %v1278
        %v1280 = vmul.f32 %v1253, 1.442695
        %v1281 = vpow.pop %v1280
        %v1282 = vmul.f32 %v1254, 1.442695
        %v1283 = vpow.pop %v1282
        %v1284 = vmul.f32 %v1255, 1.442695
        %v1285 = vpow.pop %v1284
        %v1286 = vmul.f32 %v1256, 1.442695
        %v1287 = vpow.pop %v1286
        %v1288 = vmul.f32 %v1257, 1.442695
        %v1289 = vpow.pop %v1288
        %v1290 = vsel %vm1193, %v1259, 0.0
        %v1291 = vsel %vm1193, %v1261, 0.0
        %v1292 = vsel %vm1193, %v1263, 0.0
        %v1293 = vsel %vm1193, %v1265, 0.0
        %v1294 = vsel %vm1193, %v1267, 0.0
        %v1295 = vsel %vm1193, %v1269, 0.0
        %v1296 = vsel %vm1193, %v1271, 0.0
        %v1297 = vsel %vm1193, %v1273, 0.0
        %v1298 = vsel %vm1193, %v1275, 0.0
        %v1299 = vsel %vm1193, %v1277, 0.0
        %v1300 = vsel %vm1193, %v1279, 0.0
        %v1301 = vsel %vm1193, %v1281, 0.0
        %v1302 = vsel %vm1193, %v1283, 0.0
        %v1303 = vsel %vm1193, %v1285, 0.0
        %v1304 = vsel %vm1193, %v1287, 0.0
        %v1305 = vsel %vm1193, %v1289, 0.0
        %1306 = vadd.xlane.f32.xlu0 %v1290
        %v1307 = vpop.xlane.xlu0 %1306
        %1308 = vadd.xlane.f32.xlu0 %v1291
        %v1309 = vpop.xlane.xlu0 %1308
        %1310 = vadd.xlane.f32.xlu0 %v1292
        %v1311 = vpop.xlane.xlu0 %1310
        %1312 = vadd.xlane.f32.xlu0 %v1293
        %v1313 = vpop.xlane.xlu0 %1312
        %1314 = vadd.xlane.f32.xlu0 %v1294
        %v1315 = vpop.xlane.xlu0 %1314
        %1316 = vadd.xlane.f32.xlu0 %v1295
        %v1317 = vpop.xlane.xlu0 %1316
        %1318 = vadd.xlane.f32.xlu0 %v1296
        %v1319 = vpop.xlane.xlu0 %1318
        %1320 = vadd.xlane.f32.xlu0 %v1297
        %v1321 = vpop.xlane.xlu0 %1320
        %1322 = vadd.xlane.f32.xlu0 %v1298
        %v1323 = vpop.xlane.xlu0 %1322
        %1324 = vadd.xlane.f32.xlu0 %v1299
        %v1325 = vpop.xlane.xlu0 %1324
        %1326 = vadd.xlane.f32.xlu0 %v1300
        %v1327 = vpop.xlane.xlu0 %1326
        %1328 = vadd.xlane.f32.xlu0 %v1301
        %v1329 = vpop.xlane.xlu0 %1328
        %1330 = vadd.xlane.f32.xlu0 %v1302
        %v1331 = vpop.xlane.xlu0 %1330
        %1332 = vadd.xlane.f32.xlu0 %v1303
        %v1333 = vpop.xlane.xlu0 %1332
        %1334 = vadd.xlane.f32.xlu0 %v1304
        %v1335 = vpop.xlane.xlu0 %1334
        %1336 = vadd.xlane.f32.xlu0 %v1305
        %v1337 = vpop.xlane.xlu0 %1336
        %v1338 = vlog2.pop %v1307
        %v1339 = vmul.f32 %v1338, 0.6931472
        %v1340 = vlog2.pop %v1309
        %v1341 = vmul.f32 %v1340, 0.6931472
        %v1342 = vlog2.pop %v1311
        %v1343 = vmul.f32 %v1342, 0.6931472
        %v1344 = vlog2.pop %v1313
        %v1345 = vmul.f32 %v1344, 0.6931472
        %v1346 = vlog2.pop %v1315
        %v1347 = vmul.f32 %v1346, 0.6931472
        %v1348 = vlog2.pop %v1317
        %v1349 = vmul.f32 %v1348, 0.6931472
        %v1350 = vlog2.pop %v1319
        %v1351 = vmul.f32 %v1350, 0.6931472
        %v1352 = vlog2.pop %v1321
        %v1353 = vmul.f32 %v1352, 0.6931472
        %v1354 = vlog2.pop %v1323
        %v1355 = vmul.f32 %v1354, 0.6931472
        %v1356 = vlog2.pop %v1325
        %v1357 = vmul.f32 %v1356, 0.6931472
        %v1358 = vlog2.pop %v1327
        %v1359 = vmul.f32 %v1358, 0.6931472
        %v1360 = vlog2.pop %v1329
        %v1361 = vmul.f32 %v1360, 0.6931472
        %v1362 = vlog2.pop %v1331
        %v1363 = vmul.f32 %v1362, 0.6931472
        %v1364 = vlog2.pop %v1333
        %v1365 = vmul.f32 %v1364, 0.6931472
        %v1366 = vlog2.pop %v1335
        %v1367 = vmul.f32 %v1366, 0.6931472
        %v1368 = vlog2.pop %v1337
        %v1369 = vmul.f32 %v1368, 0.6931472
        %v1370 = vadd.f32 %v1211, %v1339
        %v1371 = vadd.f32 %v1213, %v1341
        %v1372 = vadd.f32 %v1215, %v1343
        %v1373 = vadd.f32 %v1217, %v1345
        %v1374 = vadd.f32 %v1219, %v1347
        %v1375 = vadd.f32 %v1221, %v1349
        %v1376 = vadd.f32 %v1223, %v1351
        %v1377 = vadd.f32 %v1225, %v1353
        %v1378 = vadd.f32 %v1227, %v1355
        %v1379 = vadd.f32 %v1229, %v1357
        %v1380 = vadd.f32 %v1231, %v1359
        %v1381 = vadd.f32 %v1233, %v1361
        %v1382 = vadd.f32 %v1235, %v1363
        %v1383 = vadd.f32 %v1237, %v1365
        %v1384 = vadd.f32 %v1239, %v1367
        %v1385 = vadd.f32 %v1241, %v1369
        %v1386 = vld [vmem:[%s356] sm:$0xff]
        %v1387 = vld [vmem:[%s356 + $0x8] sm:$0xff]
        %v1388 = vld [vmem:[%s356 + $0x10] sm:$0xff]
        %v1389 = vld [vmem:[%s356 + $0x18] sm:$0xff]
        %v1390 = vld [vmem:[%s356 + $0x20] sm:$0xff]
        %v1391 = vld [vmem:[%s356 + $0x28] sm:$0xff]
        %v1392 = vld [vmem:[%s356 + $0x30] sm:$0xff]
        %v1393 = vld [vmem:[%s356 + $0x38] sm:$0xff]
        %v1394 = vld [vmem:[%s356 + $0x40] sm:$0xff]
        %v1395 = vld [vmem:[%s356 + $0x48] sm:$0xff]
        %v1396 = vld [vmem:[%s356 + $0x50] sm:$0xff]
        %v1397 = vld [vmem:[%s356 + $0x58] sm:$0xff]
        %v1398 = vld [vmem:[%s356 + $0x60] sm:$0xff]
        %v1399 = vld [vmem:[%s356 + $0x68] sm:$0xff]
        %v1400 = vld [vmem:[%s356 + $0x70] sm:$0xff]
        %v1401 = vld [vmem:[%s356 + $0x78] sm:$0xff]
        %v1402 = vadd.f32 %v1129, %v1386
        %v1403 = vadd.f32 %v1132, %v1387
        %v1404 = vadd.f32 %v1137, %v1388
        %v1405 = vadd.f32 %v1140, %v1389
        %v1406 = vadd.f32 %v1145, %v1390
        %v1407 = vadd.f32 %v1148, %v1391
        %v1408 = vadd.f32 %v1153, %v1392
        %v1409 = vadd.f32 %v1156, %v1393
        %v1410 = vadd.f32 %v1161, %v1394
        %v1411 = vadd.f32 %v1164, %v1395
        %v1412 = vadd.f32 %v1169, %v1396
        %v1413 = vadd.f32 %v1172, %v1397
        %v1414 = vadd.f32 %v1177, %v1398
        %v1415 = vadd.f32 %v1180, %v1399
        %v1416 = vadd.f32 %v1185, %v1400
        %v1417 = vadd.f32 %v1188, %v1401
        %v1418 = vsel %vm1193, %v1402, -1e+30
        %v1419 = vsel %vm1193, %v1403, -1e+30
        %v1420 = vsel %vm1193, %v1404, -1e+30
        %v1421 = vsel %vm1193, %v1405, -1e+30
        %v1422 = vsel %vm1193, %v1406, -1e+30
        %v1423 = vsel %vm1193, %v1407, -1e+30
        %v1424 = vsel %vm1193, %v1408, -1e+30
        %v1425 = vsel %vm1193, %v1409, -1e+30
        %v1426 = vsel %vm1193, %v1410, -1e+30
        %v1427 = vsel %vm1193, %v1411, -1e+30
        %v1428 = vsel %vm1193, %v1412, -1e+30
        %v1429 = vsel %vm1193, %v1413, -1e+30
        %v1430 = vsel %vm1193, %v1414, -1e+30
        %v1431 = vsel %vm1193, %v1415, -1e+30
        %v1432 = vsel %vm1193, %v1416, -1e+30
        %v1433 = vsel %vm1193, %v1417, -1e+30
        %1434 = vmax.xlane.f32.xlu0 %v1418
        %v1435 = vpop.xlane.xlu0 %1434
        %1436 = vmax.xlane.f32.xlu0 %v1419
        %v1437 = vpop.xlane.xlu0 %1436
        %1438 = vmax.xlane.f32.xlu0 %v1420
        %v1439 = vpop.xlane.xlu0 %1438
        %1440 = vmax.xlane.f32.xlu0 %v1421
        %v1441 = vpop.xlane.xlu0 %1440
        %1442 = vmax.xlane.f32.xlu0 %v1422
        %v1443 = vpop.xlane.xlu0 %1442
        %1444 = vmax.xlane.f32.xlu0 %v1423
        %v1445 = vpop.xlane.xlu0 %1444
        %1446 = vmax.xlane.f32.xlu0 %v1424
        %v1447 = vpop.xlane.xlu0 %1446
        %1448 = vmax.xlane.f32.xlu0 %v1425
        %v1449 = vpop.xlane.xlu0 %1448
        %1450 = vmax.xlane.f32.xlu0 %v1426
        %v1451 = vpop.xlane.xlu0 %1450
        %1452 = vmax.xlane.f32.xlu0 %v1427
        %v1453 = vpop.xlane.xlu0 %1452
        %1454 = vmax.xlane.f32.xlu0 %v1428
        %v1455 = vpop.xlane.xlu0 %1454
        %1456 = vmax.xlane.f32.xlu0 %v1429
        %v1457 = vpop.xlane.xlu0 %1456
        %1458 = vmax.xlane.f32.xlu0 %v1430
        %v1459 = vpop.xlane.xlu0 %1458
        %1460 = vmax.xlane.f32.xlu0 %v1431
        %v1461 = vpop.xlane.xlu0 %1460
        %1462 = vmax.xlane.f32.xlu0 %v1432
        %v1463 = vpop.xlane.xlu0 %1462
        %1464 = vmax.xlane.f32.xlu0 %v1433
        %v1465 = vpop.xlane.xlu0 %1464
        %vm1466 = vcmp.eq.f32.partialorder %v1418, %v1435
        %vm1467 = vcmp.eq.f32.partialorder %v1419, %v1437
        %vm1468 = vcmp.eq.f32.partialorder %v1420, %v1439
        %vm1469 = vcmp.eq.f32.partialorder %v1421, %v1441
        %vm1470 = vcmp.eq.f32.partialorder %v1422, %v1443
        %vm1471 = vcmp.eq.f32.partialorder %v1423, %v1445
        %vm1472 = vcmp.eq.f32.partialorder %v1424, %v1447
        %vm1473 = vcmp.eq.f32.partialorder %v1425, %v1449
        %vm1474 = vcmp.eq.f32.partialorder %v1426, %v1451
        %vm1475 = vcmp.eq.f32.partialorder %v1427, %v1453
        %vm1476 = vcmp.eq.f32.partialorder %v1428, %v1455
        %vm1477 = vcmp.eq.f32.partialorder %v1429, %v1457
        %vm1478 = vcmp.eq.f32.partialorder %v1430, %v1459
        %vm1479 = vcmp.eq.f32.partialorder %v1431, %v1461
        %vm1480 = vcmp.eq.f32.partialorder %v1432, %v1463
        %vm1481 = vcmp.eq.f32.partialorder %v1433, %v1465
        %v1482 = vsel %vm1466, %v1192, 128
        %v1483 = vsel %vm1467, %v1192, 128
        %v1484 = vsel %vm1468, %v1192, 128
        %v1485 = vsel %vm1469, %v1192, 128
        %v1486 = vsel %vm1470, %v1192, 128
        %v1487 = vsel %vm1471, %v1192, 128
        %v1488 = vsel %vm1472, %v1192, 128
        %v1489 = vsel %vm1473, %v1192, 128
        %v1490 = vsel %vm1474, %v1192, 128
        %v1491 = vsel %vm1475, %v1192, 128
        %v1492 = vsel %vm1476, %v1192, 128
        %v1493 = vsel %vm1477, %v1192, 128
        %v1494 = vsel %vm1478, %v1192, 128
        %v1495 = vsel %vm1479, %v1192, 128
        %v1496 = vsel %vm1480, %v1192, 128
        %v1497 = vsel %vm1481, %v1192, 128
        %v1498 = vand.u32 %v1482, 65535
        %v1499 = vshra.s32 %v1482, 16
        %v1500 = vcvt.s32.f32 %v1498
        %v1501 = vcvt.s32.f32 %v1499
        %1502 = vmin.xlane.f32.xlu0 %v1501
        %v1503 = vpop.xlane.xlu0 %1502
        %vm1504 = vcmp.eq.f32.partialorder %v1501, %v1503
        %v1505 = vsel %vm1504, %v1500, inf
        %1506 = vmin.xlane.f32.xlu0 %v1505
        %v1507 = vpop.xlane.xlu0 %1506
        %v1508 = vcvt.f32.s32 %v1507
        %v1509 = vcvt.f32.s32 %v1503
        %v1510 = vshll.u32 %v1509, 16
        %v1511 = vadd.s32 %v1510, %v1508
        %v1512 = vand.u32 %v1483, 65535
        %v1513 = vshra.s32 %v1483, 16
        %v1514 = vcvt.s32.f32 %v1512
        %v1515 = vcvt.s32.f32 %v1513
        %1516 = vmin.xlane.f32.xlu0 %v1515
        %v1517 = vpop.xlane.xlu0 %1516
        %vm1518 = vcmp.eq.f32.partialorder %v1515, %v1517
        %v1519 = vsel %vm1518, %v1514, inf
        %1520 = vmin.xlane.f32.xlu0 %v1519
        %v1521 = vpop.xlane.xlu0 %1520
        %v1522 = vcvt.f32.s32 %v1521
        %v1523 = vcvt.f32.s32 %v1517
        %v1524 = vshll.u32 %v1523, 16
        %v1525 = vadd.s32 %v1524, %v1522
        %v1526 = vand.u32 %v1484, 65535
        %v1527 = vshra.s32 %v1484, 16
        %v1528 = vcvt.s32.f32 %v1526
        %v1529 = vcvt.s32.f32 %v1527
        %1530 = vmin.xlane.f32.xlu0 %v1529
        %v1531 = vpop.xlane.xlu0 %1530
        %vm1532 = vcmp.eq.f32.partialorder %v1529, %v1531
        %v1533 = vsel %vm1532, %v1528, inf
        %1534 = vmin.xlane.f32.xlu0 %v1533
        %v1535 = vpop.xlane.xlu0 %1534
        %v1536 = vcvt.f32.s32 %v1535
        %v1537 = vcvt.f32.s32 %v1531
        %v1538 = vshll.u32 %v1537, 16
        %v1539 = vadd.s32 %v1538, %v1536
        %v1540 = vand.u32 %v1485, 65535
        %v1541 = vshra.s32 %v1485, 16
        %v1542 = vcvt.s32.f32 %v1540
        %v1543 = vcvt.s32.f32 %v1541
        %1544 = vmin.xlane.f32.xlu0 %v1543
        %v1545 = vpop.xlane.xlu0 %1544
        %vm1546 = vcmp.eq.f32.partialorder %v1543, %v1545
        %v1547 = vsel %vm1546, %v1542, inf
        %1548 = vmin.xlane.f32.xlu0 %v1547
        %v1549 = vpop.xlane.xlu0 %1548
        %v1550 = vcvt.f32.s32 %v1549
        %v1551 = vcvt.f32.s32 %v1545
        %v1552 = vshll.u32 %v1551, 16
        %v1553 = vadd.s32 %v1552, %v1550
        %v1554 = vand.u32 %v1486, 65535
        %v1555 = vshra.s32 %v1486, 16
        %v1556 = vcvt.s32.f32 %v1554
        %v1557 = vcvt.s32.f32 %v1555
        %1558 = vmin.xlane.f32.xlu0 %v1557
        %v1559 = vpop.xlane.xlu0 %1558
        %vm1560 = vcmp.eq.f32.partialorder %v1557, %v1559
        %v1561 = vsel %vm1560, %v1556, inf
        %1562 = vmin.xlane.f32.xlu0 %v1561
        %v1563 = vpop.xlane.xlu0 %1562
        %v1564 = vcvt.f32.s32 %v1563
        %v1565 = vcvt.f32.s32 %v1559
        %v1566 = vshll.u32 %v1565, 16
        %v1567 = vadd.s32 %v1566, %v1564
        %v1568 = vand.u32 %v1487, 65535
        %v1569 = vshra.s32 %v1487, 16
        %v1570 = vcvt.s32.f32 %v1568
        %v1571 = vcvt.s32.f32 %v1569
        %1572 = vmin.xlane.f32.xlu0 %v1571
        %v1573 = vpop.xlane.xlu0 %1572
        %vm1574 = vcmp.eq.f32.partialorder %v1571, %v1573
        %v1575 = vsel %vm1574, %v1570, inf
        %1576 = vmin.xlane.f32.xlu0 %v1575
        %v1577 = vpop.xlane.xlu0 %1576
        %v1578 = vcvt.f32.s32 %v1577
        %v1579 = vcvt.f32.s32 %v1573
        %v1580 = vshll.u32 %v1579, 16
        %v1581 = vadd.s32 %v1580, %v1578
        %v1582 = vand.u32 %v1488, 65535
        %v1583 = vshra.s32 %v1488, 16
        %v1584 = vcvt.s32.f32 %v1582
        %v1585 = vcvt.s32.f32 %v1583
        %1586 = vmin.xlane.f32.xlu0 %v1585
        %v1587 = vpop.xlane.xlu0 %1586
        %vm1588 = vcmp.eq.f32.partialorder %v1585, %v1587
        %v1589 = vsel %vm1588, %v1584, inf
        %1590 = vmin.xlane.f32.xlu0 %v1589
        %v1591 = vpop.xlane.xlu0 %1590
        %v1592 = vcvt.f32.s32 %v1591
        %v1593 = vcvt.f32.s32 %v1587
        %v1594 = vshll.u32 %v1593, 16
        %v1595 = vadd.s32 %v1594, %v1592
        %v1596 = vand.u32 %v1489, 65535
        %v1597 = vshra.s32 %v1489, 16
        %v1598 = vcvt.s32.f32 %v1596
        %v1599 = vcvt.s32.f32 %v1597
        %1600 = vmin.xlane.f32.xlu0 %v1599
        %v1601 = vpop.xlane.xlu0 %1600
        %vm1602 = vcmp.eq.f32.partialorder %v1599, %v1601
        %v1603 = vsel %vm1602, %v1598, inf
        %1604 = vmin.xlane.f32.xlu0 %v1603
        %v1605 = vpop.xlane.xlu0 %1604
        %v1606 = vcvt.f32.s32 %v1605
        %v1607 = vcvt.f32.s32 %v1601
        %v1608 = vshll.u32 %v1607, 16
        %v1609 = vadd.s32 %v1608, %v1606
        %v1610 = vand.u32 %v1490, 65535
        %v1611 = vshra.s32 %v1490, 16
        %v1612 = vcvt.s32.f32 %v1610
        %v1613 = vcvt.s32.f32 %v1611
        %1614 = vmin.xlane.f32.xlu0 %v1613
        %v1615 = vpop.xlane.xlu0 %1614
        %vm1616 = vcmp.eq.f32.partialorder %v1613, %v1615
        %v1617 = vsel %vm1616, %v1612, inf
        %1618 = vmin.xlane.f32.xlu0 %v1617
        %v1619 = vpop.xlane.xlu0 %1618
        %v1620 = vcvt.f32.s32 %v1619
        %v1621 = vcvt.f32.s32 %v1615
        %v1622 = vshll.u32 %v1621, 16
        %v1623 = vadd.s32 %v1622, %v1620
        %v1624 = vand.u32 %v1491, 65535
        %v1625 = vshra.s32 %v1491, 16
        %v1626 = vcvt.s32.f32 %v1624
        %v1627 = vcvt.s32.f32 %v1625
        %1628 = vmin.xlane.f32.xlu0 %v1627
        %v1629 = vpop.xlane.xlu0 %1628
        %vm1630 = vcmp.eq.f32.partialorder %v1627, %v1629
        %v1631 = vsel %vm1630, %v1626, inf
        %1632 = vmin.xlane.f32.xlu0 %v1631
        %v1633 = vpop.xlane.xlu0 %1632
        %v1634 = vcvt.f32.s32 %v1633
        %v1635 = vcvt.f32.s32 %v1629
        %v1636 = vshll.u32 %v1635, 16
        %v1637 = vadd.s32 %v1636, %v1634
        %v1638 = vand.u32 %v1492, 65535
        %v1639 = vshra.s32 %v1492, 16
        %v1640 = vcvt.s32.f32 %v1638
        %v1641 = vcvt.s32.f32 %v1639
        %1642 = vmin.xlane.f32.xlu0 %v1641
        %v1643 = vpop.xlane.xlu0 %1642
        %vm1644 = vcmp.eq.f32.partialorder %v1641, %v1643
        %v1645 = vsel %vm1644, %v1640, inf
        %1646 = vmin.xlane.f32.xlu0 %v1645
        %v1647 = vpop.xlane.xlu0 %1646
        %v1648 = vcvt.f32.s32 %v1647
        %v1649 = vcvt.f32.s32 %v1643
        %v1650 = vshll.u32 %v1649, 16
        %v1651 = vadd.s32 %v1650, %v1648
        %v1652 = vand.u32 %v1493, 65535
        %v1653 = vshra.s32 %v1493, 16
        %v1654 = vcvt.s32.f32 %v1652
        %v1655 = vcvt.s32.f32 %v1653
        %1656 = vmin.xlane.f32.xlu0 %v1655
        %v1657 = vpop.xlane.xlu0 %1656
        %vm1658 = vcmp.eq.f32.partialorder %v1655, %v1657
        %v1659 = vsel %vm1658, %v1654, inf
        %1660 = vmin.xlane.f32.xlu0 %v1659
        %v1661 = vpop.xlane.xlu0 %1660
        %v1662 = vcvt.f32.s32 %v1661
        %v1663 = vcvt.f32.s32 %v1657
        %v1664 = vshll.u32 %v1663, 16
        %v1665 = vadd.s32 %v1664, %v1662
        %v1666 = vand.u32 %v1494, 65535
        %v1667 = vshra.s32 %v1494, 16
        %v1668 = vcvt.s32.f32 %v1666
        %v1669 = vcvt.s32.f32 %v1667
        %1670 = vmin.xlane.f32.xlu0 %v1669
        %v1671 = vpop.xlane.xlu0 %1670
        %vm1672 = vcmp.eq.f32.partialorder %v1669, %v1671
        %v1673 = vsel %vm1672, %v1668, inf
        %1674 = vmin.xlane.f32.xlu0 %v1673
        %v1675 = vpop.xlane.xlu0 %1674
        %v1676 = vcvt.f32.s32 %v1675
        %v1677 = vcvt.f32.s32 %v1671
        %v1678 = vshll.u32 %v1677, 16
        %v1679 = vadd.s32 %v1678, %v1676
        %v1680 = vand.u32 %v1495, 65535
        %v1681 = vshra.s32 %v1495, 16
        %v1682 = vcvt.s32.f32 %v1680
        %v1683 = vcvt.s32.f32 %v1681
        %1684 = vmin.xlane.f32.xlu0 %v1683
        %v1685 = vpop.xlane.xlu0 %1684
        %vm1686 = vcmp.eq.f32.partialorder %v1683, %v1685
        %v1687 = vsel %vm1686, %v1682, inf
        %1688 = vmin.xlane.f32.xlu0 %v1687
        %v1689 = vpop.xlane.xlu0 %1688
        %v1690 = vcvt.f32.s32 %v1689
        %v1691 = vcvt.f32.s32 %v1685
        %v1692 = vshll.u32 %v1691, 16
        %v1693 = vadd.s32 %v1692, %v1690
        %v1694 = vand.u32 %v1496, 65535
        %v1695 = vshra.s32 %v1496, 16
        %v1696 = vcvt.s32.f32 %v1694
        %v1697 = vcvt.s32.f32 %v1695
        %1698 = vmin.xlane.f32.xlu0 %v1697
        %v1699 = vpop.xlane.xlu0 %1698
        %vm1700 = vcmp.eq.f32.partialorder %v1697, %v1699
        %v1701 = vsel %vm1700, %v1696, inf
        %1702 = vmin.xlane.f32.xlu0 %v1701
        %v1703 = vpop.xlane.xlu0 %1702
        %v1704 = vcvt.f32.s32 %v1703
        %v1705 = vcvt.f32.s32 %v1699
        %v1706 = vshll.u32 %v1705, 16
        %v1707 = vadd.s32 %v1706, %v1704
        %v1708 = vand.u32 %v1497, 65535
        %v1709 = vshra.s32 %v1497, 16
        %v1710 = vcvt.s32.f32 %v1708
        %v1711 = vcvt.s32.f32 %v1709
        %1712 = vmin.xlane.f32.xlu0 %v1711
        %v1713 = vpop.xlane.xlu0 %1712
        %vm1714 = vcmp.eq.f32.partialorder %v1711, %v1713
        %v1715 = vsel %vm1714, %v1710, inf
        %1716 = vmin.xlane.f32.xlu0 %v1715
        %v1717 = vpop.xlane.xlu0 %1716
        %v1718 = vcvt.f32.s32 %v1717
        %v1719 = vcvt.f32.s32 %v1713
        %v1720 = vshll.u32 %v1719, 16
        %v1721 = vadd.s32 %v1720, %v1718
        %vm1722 = vcmp.eq.s32.totalorder %v1192, %v1511
        %vm1723 = vcmp.eq.s32.totalorder %v1192, %v1525
        %vm1724 = vcmp.eq.s32.totalorder %v1192, %v1539
        %vm1725 = vcmp.eq.s32.totalorder %v1192, %v1553
        %vm1726 = vcmp.eq.s32.totalorder %v1192, %v1567
        %vm1727 = vcmp.eq.s32.totalorder %v1192, %v1581
        %vm1728 = vcmp.eq.s32.totalorder %v1192, %v1595
        %vm1729 = vcmp.eq.s32.totalorder %v1192, %v1609
        %vm1730 = vcmp.eq.s32.totalorder %v1192, %v1623
        %vm1731 = vcmp.eq.s32.totalorder %v1192, %v1637
        %vm1732 = vcmp.eq.s32.totalorder %v1192, %v1651
        %vm1733 = vcmp.eq.s32.totalorder %v1192, %v1665
        %vm1734 = vcmp.eq.s32.totalorder %v1192, %v1679
        %vm1735 = vcmp.eq.s32.totalorder %v1192, %v1693
        %vm1736 = vcmp.eq.s32.totalorder %v1192, %v1707
        %vm1737 = vcmp.eq.s32.totalorder %v1192, %v1721
        %v1738 = vsel %vm1722, %v1129, 0.0
        %v1739 = vsel %vm1723, %v1132, 0.0
        %v1740 = vsel %vm1724, %v1137, 0.0
        %v1741 = vsel %vm1725, %v1140, 0.0
        %v1742 = vsel %vm1726, %v1145, 0.0
        %v1743 = vsel %vm1727, %v1148, 0.0
        %v1744 = vsel %vm1728, %v1153, 0.0
        %v1745 = vsel %vm1729, %v1156, 0.0
        %v1746 = vsel %vm1730, %v1161, 0.0
        %v1747 = vsel %vm1731, %v1164, 0.0
        %v1748 = vsel %vm1732, %v1169, 0.0
        %v1749 = vsel %vm1733, %v1172, 0.0
        %v1750 = vsel %vm1734, %v1177, 0.0
        %v1751 = vsel %vm1735, %v1180, 0.0
        %v1752 = vsel %vm1736, %v1185, 0.0
        %v1753 = vsel %vm1737, %v1188, 0.0
        %1754 = vadd.xlane.f32.xlu0 %v1738
        %v1755 = vpop.xlane.xlu0 %1754
        %1756 = vadd.xlane.f32.xlu0 %v1739
        %v1757 = vpop.xlane.xlu0 %1756
        %1758 = vadd.xlane.f32.xlu0 %v1740
        %v1759 = vpop.xlane.xlu0 %1758
        %1760 = vadd.xlane.f32.xlu0 %v1741
        %v1761 = vpop.xlane.xlu0 %1760
        %1762 = vadd.xlane.f32.xlu0 %v1742
        %v1763 = vpop.xlane.xlu0 %1762
        %1764 = vadd.xlane.f32.xlu0 %v1743
        %v1765 = vpop.xlane.xlu0 %1764
        %1766 = vadd.xlane.f32.xlu0 %v1744
        %v1767 = vpop.xlane.xlu0 %1766
        %1768 = vadd.xlane.f32.xlu0 %v1745
        %v1769 = vpop.xlane.xlu0 %1768
        %1770 = vadd.xlane.f32.xlu0 %v1746
        %v1771 = vpop.xlane.xlu0 %1770
        %1772 = vadd.xlane.f32.xlu0 %v1747
        %v1773 = vpop.xlane.xlu0 %1772
        %1774 = vadd.xlane.f32.xlu0 %v1748
        %v1775 = vpop.xlane.xlu0 %1774
        %1776 = vadd.xlane.f32.xlu0 %v1749
        %v1777 = vpop.xlane.xlu0 %1776
        %1778 = vadd.xlane.f32.xlu0 %v1750
        %v1779 = vpop.xlane.xlu0 %1778
        %1780 = vadd.xlane.f32.xlu0 %v1751
        %v1781 = vpop.xlane.xlu0 %1780
        %1782 = vadd.xlane.f32.xlu0 %v1752
        %v1783 = vpop.xlane.xlu0 %1782
        %1784 = vadd.xlane.f32.xlu0 %v1753
        %v1785 = vpop.xlane.xlu0 %1784
        %vm1786 = vcmp.ge.s32.totalorder %v1192, 8
        %vm1787 = vcmp.lt.s32.totalorder %v1192, 16
        %vm1788 = vmand %vm1786, %vm1787
        %v1789 = vsub.f32 %v1129, %v1370
        %v1790 = vsub.f32 %v1132, %v1371
        %v1791 = vsub.f32 %v1137, %v1372
        %v1792 = vsub.f32 %v1140, %v1373
        %v1793 = vsub.f32 %v1145, %v1374
        %v1794 = vsub.f32 %v1148, %v1375
        %v1795 = vsub.f32 %v1153, %v1376
        %v1796 = vsub.f32 %v1156, %v1377
        %v1797 = vsub.f32 %v1161, %v1378
        %v1798 = vsub.f32 %v1164, %v1379
        %v1799 = vsub.f32 %v1169, %v1380
        %v1800 = vsub.f32 %v1172, %v1381
        %v1801 = vsub.f32 %v1177, %v1382
        %v1802 = vsub.f32 %v1180, %v1383
        %v1803 = vsub.f32 %v1185, %v1384
        %v1804 = vsub.f32 %v1188, %v1385
        %v1805 = vsel %vm1788, %v1789, %v1129
        %v1806 = vsel %vm1788, %v1790, %v1132
        %v1807 = vsel %vm1788, %v1791, %v1137
        %v1808 = vsel %vm1788, %v1792, %v1140
        %v1809 = vsel %vm1788, %v1793, %v1145
        %v1810 = vsel %vm1788, %v1794, %v1148
        %v1811 = vsel %vm1788, %v1795, %v1153
        %v1812 = vsel %vm1788, %v1796, %v1156
        %v1813 = vsel %vm1788, %v1797, %v1161
        %v1814 = vsel %vm1788, %v1798, %v1164
        %v1815 = vsel %vm1788, %v1799, %v1169
        %v1816 = vsel %vm1788, %v1800, %v1172
        %v1817 = vsel %vm1788, %v1801, %v1177
        %v1818 = vsel %vm1788, %v1802, %v1180
        %v1819 = vsel %vm1788, %v1803, %v1185
        %v1820 = vsel %vm1788, %v1804, %v1188
        %vm1821 = vcmp.eq.s32.totalorder %v1192, 17
        %v1822 = vcvt.s32.f32 %v1511
        %v1823 = vcvt.s32.f32 %v1525
        %v1824 = vcvt.s32.f32 %v1539
        %v1825 = vcvt.s32.f32 %v1553
        %v1826 = vcvt.s32.f32 %v1567
        %v1827 = vcvt.s32.f32 %v1581
        %v1828 = vcvt.s32.f32 %v1595
        %v1829 = vcvt.s32.f32 %v1609
        %v1830 = vcvt.s32.f32 %v1623
        %v1831 = vcvt.s32.f32 %v1637
        %v1832 = vcvt.s32.f32 %v1651
        %v1833 = vcvt.s32.f32 %v1665
        %v1834 = vcvt.s32.f32 %v1679
        %v1835 = vcvt.s32.f32 %v1693
        %v1836 = vcvt.s32.f32 %v1707
        %v1837 = vcvt.s32.f32 %v1721
        %v1838 = vsel %vm1821, %v1822, %v1805
        %v1839 = vsel %vm1821, %v1823, %v1806
        %v1840 = vsel %vm1821, %v1824, %v1807
        %v1841 = vsel %vm1821, %v1825, %v1808
        %v1842 = vsel %vm1821, %v1826, %v1809
        %v1843 = vsel %vm1821, %v1827, %v1810
        %v1844 = vsel %vm1821, %v1828, %v1811
        %v1845 = vsel %vm1821, %v1829, %v1812
        %v1846 = vsel %vm1821, %v1830, %v1813
        %v1847 = vsel %vm1821, %v1831, %v1814
        %v1848 = vsel %vm1821, %v1832, %v1815
        %v1849 = vsel %vm1821, %v1833, %v1816
        %v1850 = vsel %vm1821, %v1834, %v1817
        %v1851 = vsel %vm1821, %v1835, %v1818
        %v1852 = vsel %vm1821, %v1836, %v1819
        %v1853 = vsel %vm1821, %v1837, %v1820
        %vm1854 = vcmp.eq.s32.totalorder %v1192, 18
        %v1855 = vsub.f32 %v1755, %v1370
        %v1856 = vsub.f32 %v1757, %v1371
        %v1857 = vsub.f32 %v1759, %v1372
        %v1858 = vsub.f32 %v1761, %v1373
        %v1859 = vsub.f32 %v1763, %v1374
        %v1860 = vsub.f32 %v1765, %v1375
        %v1861 = vsub.f32 %v1767, %v1376
        %v1862 = vsub.f32 %v1769, %v1377
        %v1863 = vsub.f32 %v1771, %v1378
        %v1864 = vsub.f32 %v1773, %v1379
        %v1865 = vsub.f32 %v1775, %v1380
        %v1866 = vsub.f32 %v1777, %v1381
        %v1867 = vsub.f32 %v1779, %v1382
        %v1868 = vsub.f32 %v1781, %v1383
        %v1869 = vsub.f32 %v1783, %v1384
        %v1870 = vsub.f32 %v1785, %v1385
        %v1871 = vsel %vm1854, %v1855, %v1838
        %v1872 = vsel %vm1854, %v1856, %v1839
        %v1873 = vsel %vm1854, %v1857, %v1840
        %v1874 = vsel %vm1854, %v1858, %v1841
        %v1875 = vsel %vm1854, %v1859, %v1842
        %v1876 = vsel %vm1854, %v1860, %v1843
        %v1877 = vsel %vm1854, %v1861, %v1844
        %v1878 = vsel %vm1854, %v1862, %v1845
        %v1879 = vsel %vm1854, %v1863, %v1846
        %v1880 = vsel %vm1854, %v1864, %v1847
        %v1881 = vsel %vm1854, %v1865, %v1848
        %v1882 = vsel %vm1854, %v1866, %v1849
        %v1883 = vsel %vm1854, %v1867, %v1850
        %v1884 = vsel %vm1854, %v1868, %v1851
        %v1885 = vsel %vm1854, %v1869, %v1852
        %v1886 = vsel %vm1854, %v1870, %v1853
        %1887 = vst [vmem:[%s345] sm:$0xff] %v1871
        %1888 = vst [vmem:[%s345 + $0x8] sm:$0xff] %v1872
        %1889 = vst [vmem:[%s345 + $0x10] sm:$0xff] %v1873
        %1890 = vst [vmem:[%s345 + $0x18] sm:$0xff] %v1874
        %1891 = vst [vmem:[%s345 + $0x20] sm:$0xff] %v1875
        %1892 = vst [vmem:[%s345 + $0x28] sm:$0xff] %v1876
        %1893 = vst [vmem:[%s345 + $0x30] sm:$0xff] %v1877
        %1894 = vst [vmem:[%s345 + $0x38] sm:$0xff] %v1878
        %1895 = vst [vmem:[%s345 + $0x40] sm:$0xff] %v1879
        %1896 = vst [vmem:[%s345 + $0x48] sm:$0xff] %v1880
        %1897 = vst [vmem:[%s345 + $0x50] sm:$0xff] %v1881
        %1898 = vst [vmem:[%s345 + $0x58] sm:$0xff] %v1882
        %1899 = vst [vmem:[%s345 + $0x60] sm:$0xff] %v1883
        %1900 = vst [vmem:[%s345 + $0x68] sm:$0xff] %v1884
        %1901 = vst [vmem:[%s345 + $0x70] sm:$0xff] %v1885
        %1902 = vst [vmem:[%s345 + $0x78] sm:$0xff] %v1886
        %s1903 = sand.u32 %s210, 1
        %s1904 = scalar_lea.sflag [#allocation4], %s1903
        %s1905 = sand.u32 %s210, 1
        %s1906 = smul.addr %s1905, 128
        %s1907 = scalar_lea.vmem [#allocation7], %s1906
        // Predicated region
        $region61: #{tpu_custom_call.1} parent=51 // pred_check
          %p1908 = pneg %p220
        $region62: #{tpu_custom_call.1} parent=51 // pred_check_branch
          %1910 = sbr.rel (%p1908) target = $region64
        $region63: #{tpu_custom_call.1} parent=51 // pred_region
          %s1911 = smul.u32 16, %s24
          %s1913 = ssub.s32 2048, 2048
          %1914 = vsyncadd %s1904, %s1913
          %s1915 = smul.addr %s1911, 128
          %s1916 = scalar_lea.hbm %s8, %s1915
          %s1917 = sshll.u32 %s1907, 4
          %s1918 = int_to_ptr.vmem [resolvable:$true] %s1917
          %1923 = dma.vmem_to_hbm [thread:$0]  %s1918, 2048, %s1916, %s1904, 128, 128, 8
        $region64: #{tpu_custom_call.1} parent=51 // pred_fallthru
          _
      $region52: #{tpu_custom_call.1} parent=5 // pred_fallthru
        _
      %p1924 = scmp.le.s32.totalorder 2, %s19
      // Predicated region
      $region65: #{tpu_custom_call.1} parent=5 // pred_check
        %p1925 = pneg %p1924
      $region66: #{tpu_custom_call.1} parent=5 // pred_check_branch
        %1927 = sbr.rel (%p1925) target = $region68
      $region67: #{tpu_custom_call.1} parent=5 // pred_region
        %s1928 = ssub.s32 %s19, 2
        // Predicated region
        $region69: #{tpu_custom_call.1} parent=67 // pred_check
          %p1929 = pneg %p226
        $region70: #{tpu_custom_call.1} parent=67 // pred_check_branch
          %1931 = sbr.rel (%p1929) target = $region72
        $region71: #{tpu_custom_call.1} parent=67 // pred_region
          %s1932 = sand.u32 %s211, 1
          %s1933 = scalar_lea.sflag [#allocation4], %s1932
          %s1934 = sand.u32 %s211, 1
          %s1935 = smul.addr %s1934, 128
          %s1936 = scalar_lea.vmem [#allocation7], %s1935
          %1937 = dma.done %s1933, 2048
        $region72: #{tpu_custom_call.1} parent=67 // pred_fallthru
          _
      $region68: #{tpu_custom_call.1} parent=5 // pred_fallthru
        _
    $region6: #{tpu_custom_call.1} parent=1 // loop_footer
      %s23 = sadd.s32 1, %s19
    $region7: #{tpu_custom_call.1} parent=1 // loop_footer_branch
      %18 = sbr.rel target = $region3
    $region8: #{tpu_custom_call.1} parent=1 // loop_exit
      _
    %1938 = vsyncpa [#allocation3], 1
    %s1939 = scalar_lea.sflag [#allocation3], 1
    %1940 = vsyncpa %s1939, 1
    %1941 = vsyncpa [#allocation6], 1
    %1942 = vsyncpa [#allocation4], 1
    %s1943 = scalar_lea.sflag [#allocation4], 1
    %1944 = vsyncpa %s1943, 1

</llo_original>
